<compile_context>
chip_gen: v6e
topology: v6e:2x2x1
jax: 0.10.0
libtpu: 0.0.40
codegen_flags: <defaults>
</compile_context>

<pallas_src>
import jax
import jax.numpy as jnp
from jax.experimental import pallas as pl
from jax.experimental.pallas import tpu as pltpu

EPS = 1e-5  # PyTorch BatchNorm1d default eps

VMEM_LIMIT = 32 * 1024 * 1024          # explicit scoped-VMEM limit (v5e default is only 16 MiB)
FUSED_VMEM_BUDGET = 20 * 1024 * 1024   # data budget for the fully-fused path; conservative so it
                                       # is safe on v7x (64 MiB physical VMEM). On v5e/v6e
                                       # (128 MiB VMEM) this could be raised to ~96 MiB.


# ============================================================================ fused path

def _make_fused_kernel(has_shortcut):
    """Single-launch kernel: everything VMEM-resident, net kept in VMEM scratch."""

    def kernel(x_ref, g0_ref, be0_ref, w0_ref, b0_ref,
               g1_ref, be1_ref, w1_ref, b1_ref, *rest):
        if has_shortcut:
            ws_ref, out_ref, net_ref = rest
        else:
            out_ref, net_ref = rest

        B, C_in, T = x_ref.shape
        C_h = w0_ref.shape[0]
        inv_n = 1.0 / float(B * T)

        # ---- training-mode BN stats of x over (B, T): centered two-pass (VMEM-resident)
        s0 = jnp.zeros((C_in, 1), jnp.float32)
        for b in range(B):
            s0 = s0 + jnp.sum(x_ref[b], axis=1, keepdims=True)
        mean0 = s0 * inv_n
        v0 = jnp.zeros((C_in, 1), jnp.float32)
        for b in range(B):
            d = x_ref[b] - mean0
            v0 = v0 + jnp.sum(d * d, axis=1, keepdims=True)
        rstd0 = jax.lax.rsqrt(v0 * inv_n + EPS)

        # fold conditional affine (gamma/beta come in pre-transposed as (C_in, B))
        scale0 = g0_ref[...] * rstd0                 # (C_in, B)
        shift0 = be0_ref[...] - scale0 * mean0       # (C_in, B)

        # ---- net = fc_0(relu(cbn_0(x)))  (weight-stationary 1x1 conv per batch)
        for b in range(B):
            h0 = jnp.maximum(scale0[:, b:b + 1] * x_ref[b] + shift0[:, b:b + 1], 0.0)
            net_ref[b] = (jnp.dot(w0_ref[...], h0, preferred_element_type=jnp.float32)
                          + b0_ref[...])

        # ---- training-mode BN stats of net (centered two-pass)
        s1 = jnp.zeros((C_h, 1), jnp.float32)
        for b in range(B):
            s1 = s1 + jnp.sum(net_ref[b], axis=1, keepdims=True)
        mean1 = s1 * inv_n
        v1 = jnp.zeros((C_h, 1), jnp.float32)
        for b in range(B):
            d = net_ref[b] - mean1
            v1 = v1 + jnp.sum(d * d, axis=1, keepdims=True)
        rstd1 = jax.lax.rsqrt(v1 * inv_n + EPS)

        scale1 = g1_ref[...] * rstd1                 # (C_h, B)
        shift1 = be1_ref[...] - scale1 * mean1       # (C_h, B)

        # ---- out = shortcut(x) + fc_1(relu(cbn_1(net)))
        for b in range(B):
            h1 = jnp.maximum(scale1[:, b:b + 1] * net_ref[b] + shift1[:, b:b + 1], 0.0)
            dx = jnp.dot(w1_ref[...], h1, preferred_element_type=jnp.float32) + b1_ref[...]
            if has_shortcut:
                out_ref[b] = (jnp.dot(ws_ref[...], x_ref[b],
                                      preferred_element_type=jnp.float32) + dx)
            else:
                out_ref[b] = x_ref[b] + dx

    return kernel


def _const_spec(shape):
    nd = len(shape)
    return pl.BlockSpec(tuple(shape), lambda i: (0,) * nd)


def _forward_fused(x, c, p):
    B, C_in, T = x.shape
    C_h = p["w0"].shape[0]
    C_out = p["w1"].shape[0]
    has_sc = p.get("ws") is not None

    # gamma/beta depend only on c + params (not on the batch stats); tiny matmuls,
    # pre-transposed to (F, B) so the kernel broadcasts them without any relayout.
    g0 = (c @ p["wg0"] + p["bg0"]).T.astype(jnp.float32)   # (C_in, B)
    be0 = (c @ p["wb0"] + p["bb0"]).T.astype(jnp.float32)  # (C_in, B)
    g1 = (c @ p["wg1"] + p["bg1"]).T.astype(jnp.float32)   # (C_h, B)
    be1 = (c @ p["wb1"] + p["bb1"]).T.astype(jnp.float32)  # (C_h, B)

    inputs = [x, g0, be0, p["w0"], p["b0"], g1, be1, p["w1"], p["b1"]]
    if has_sc:
        inputs.append(p["ws"])

    out = pl.pallas_call(
        _make_fused_kernel(has_sc),
        out_shape=jax.ShapeDtypeStruct((B, C_out, T), jnp.float32),
        grid=(1,),
        in_specs=[_const_spec(a.shape) for a in inputs],
        out_specs=_const_spec((B, C_out, T)),
        scratch_shapes=[pltpu.VMEM((B, C_h, T), jnp.float32)],   # net stays in VMEM
        compiler_params=pltpu.CompilerParams(
            dimension_semantics=("arbitrary",), vmem_limit_bytes=VMEM_LIMIT),
    )(*inputs)
    return out


# ============================================================================ tiled fallback

def _coalesced_stats(v):
    """(C, t) tile -> (C, 2) [sum, sum_sq] as one block (single RMW / single store)."""
    s = jnp.sum(v, axis=1, keepdims=True)
    ss = jnp.sum(v * v, axis=1, keepdims=True)
    col = jax.lax.broadcasted_iota(jnp.int32, (v.shape[0], 2), 1)
    return jnp.where(col == 0, s, ss)


def _xstats_kernel(x_ref, stats_ref):
    """Per-batch partial per-channel sum / sum-of-squares of x (accumulated over T)."""
    @pl.when(pl.program_id(1) == 0)
    def _init():
        stats_ref[...] = jnp.zeros_like(stats_ref)
    stats_ref[...] += _coalesced_stats(x_ref[...])


def _mid_kernel(x_ref, s0_ref, sh0_ref, w0_ref, b0_ref, net_ref, nstats_ref):
    """net = w0 @ relu(scale0*x + shift0) + b0, plus per-batch partial stats of net."""
    @pl.when(pl.program_id(1) == 0)
    def _init():
        nstats_ref[...] = jnp.zeros_like(nstats_ref)

    h = jnp.maximum(s0_ref[...] * x_ref[...] + sh0_ref[...], 0.0)        # (C_in, t)
    net = jnp.dot(w0_ref[...], h, preferred_element_type=jnp.float32)    # (C_h, t)
    net = net + b0_ref[...]
    net_ref[...] = net
    nstats_ref[...] += _coalesced_stats(net)


def _out_kernel_identity(net_ref, x_ref, s1_ref, sh1_ref, w1_ref, b1_ref, out_ref):
    """out = x + w1 @ relu(scale1*net + shift1) + b1  (identity shortcut: no matmul)."""
    h1 = jnp.maximum(s1_ref[...] * net_ref[...] + sh1_ref[...], 0.0)     # (C_h, t)
    out_ref[...] = (x_ref[...]
                    + jnp.dot(w1_ref[...], h1, preferred_element_type=jnp.float32)
                    + b1_ref[...])


def _out_kernel_proj(net_ref, x_ref, s1_ref, sh1_ref, w1_ref, ws_ref, b1_ref, out_ref):
    """out = w1 @ relu(scale1*net + shift1) + ws @ x + b1 (two dots, no per-step concat)."""
    h1 = jnp.maximum(s1_ref[...] * net_ref[...] + sh1_ref[...], 0.0)     # (C_h, t)
    out_ref[...] = (jnp.dot(w1_ref[...], h1, preferred_element_type=jnp.float32)
                    + jnp.dot(ws_ref[...], x_ref[...], preferred_element_type=jnp.float32)
                    + b1_ref[...])


def _pick_t_tile(T, c_total, cap=8192, step_budget_bytes=8 * 1024 * 1024):
    """Largest power-of-two multiple of 128 dividing T whose double-buffered per-step
    tiles stay under ~8 MiB (keeps the explicit 32 MiB limit / v7x's 64 MiB safe)."""
    if T % 128 != 0:
        return T  # small / odd T: single full-width block (block == full dim is legal)
    vmem_cap = max(128, step_budget_bytes // (8 * max(c_total, 1)))  # 4 B * 2 buffers per lane col
    cap = min(cap, vmem_cap)
    t = 128
    while t * 2 <= min(T, cap) and T % (t * 2) == 0:
        t *= 2
    return t


def _fold_cbn(c, wg, bg, wb, bb, stats, n):
    """Fold conditional BN (training-mode batch stats) + affine into scale/shift."""
    # TODO(synk): sum/sumsq variance can cancel for |mean| >> std; the fused path uses
    # centered variance, this tiled fallback keeps the streaming sum/sumsq form.
    gamma = c @ wg + bg                                    # (B, F)
    beta = c @ wb + bb                                     # (B, F)
    mean = stats[:, 0] / n                                 # (F,)
    var = jnp.maximum(stats[:, 1] / n - mean * mean, 0.0)  # biased variance, f32 accum
    inv = jax.lax.rsqrt(var + EPS)
    scale = gamma * inv[None, :]
    shift = beta - scale * mean[None, :]
    return scale[:, :, None], shift[:, :, None]            # (B, F, 1) each


def _forward_tiled(x, c, p, *, t_tile=None):
    B, C_in, T = x.shape
    C_h = p["w0"].shape[0]
    C_out = p["w1"].shape[0]
    if t_tile is None:
        t_tile = _pick_t_tile(T, C_in + C_h + C_out)
    assert T % t_tile == 0, "T must be divisible by the chosen T tile"
    num_t = T // t_tile
    n_elems = float(B * T)

    cp_stats = pltpu.CompilerParams(                       # batch axis parallel -> 2 TCs on v7x
        dimension_semantics=("parallel", "arbitrary"), vmem_limit_bytes=VMEM_LIMIT)
    cp_par = pltpu.CompilerParams(
        dimension_semantics=("parallel", "parallel"), vmem_limit_bytes=VMEM_LIMIT)

    # -------- pass 1: per-batch partial per-channel stats of x
    xstats = pl.pallas_call(
        _xstats_kernel,
        out_shape=jax.ShapeDtypeStruct((B, C_in, 2), jnp.float32),
        grid=(B, num_t),
        in_specs=[pl.BlockSpec((None, C_in, t_tile), lambda b, t: (b, 0, t))],
        out_specs=pl.BlockSpec((None, C_in, 2), lambda b, t: (b, 0, 0)),
        compiler_params=cp_stats,
    )(x)
    scale0, shift0 = _fold_cbn(c, p["wg0"], p["bg0"], p["wb0"], p["bb0"],
                               jnp.sum(xstats, axis=0), n_elems)

    # -------- pass 2: net = fc_0(relu(cbn_0(x))) + per-batch partial stats of net (fused)
    net, nstats = pl.pallas_call(
        _mid_kernel,
        out_shape=(jax.ShapeDtypeStruct((B, C_h, T), jnp.float32),
                   jax.ShapeDtypeStruct((B, C_h, 2), jnp.float32)),
        grid=(B, num_t),
        in_specs=[
            pl.BlockSpec((None, C_in, t_tile), lambda b, t: (b, 0, t)),  # x
            pl.BlockSpec((None, C_in, 1), lambda b, t: (b, 0, 0)),       # scale0 (per batch)
            pl.BlockSpec((None, C_in, 1), lambda b, t: (b, 0, 0)),       # shift0
            pl.BlockSpec((C_h, C_in), lambda b, t: (0, 0)),              # w0 (resident)
            pl.BlockSpec((C_h, 1), lambda b, t: (0, 0)),                 # b0 (resident)
        ],
        out_specs=(pl.BlockSpec((None, C_h, t_tile), lambda b, t: (b, 0, t)),
                   pl.BlockSpec((None, C_h, 2), lambda b, t: (b, 0, 0))),
        compiler_params=cp_stats,
    )(x, scale0, shift0, p["w0"], p["b0"])

    scale1, shift1 = _fold_cbn(c, p["wg1"], p["bg1"], p["wb1"], p["bb1"],
                               jnp.sum(nstats, axis=0), n_elems)

    # -------- pass 3: out = shortcut(x) + fc_1(relu(cbn_1(net)))
    has_sc = p.get("ws") is not None
    inputs = [net, x, scale1, shift1, p["w1"]]
    in_specs = [
        pl.BlockSpec((None, C_h, t_tile), lambda b, t: (b, 0, t)),       # net
        pl.BlockSpec((None, C_in, t_tile), lambda b, t: (b, 0, t)),      # x (shortcut)
        pl.BlockSpec((None, C_h, 1), lambda b, t: (b, 0, 0)),            # scale1
        pl.BlockSpec((None, C_h, 1), lambda b, t: (b, 0, 0)),            # shift1
        pl.BlockSpec((C_out, C_h), lambda b, t: (0, 0)),                 # w1 (resident)
    ]
    if has_sc:
        inputs.append(p["ws"])
        in_specs.append(pl.BlockSpec((C_out, C_in), lambda b, t: (0, 0)))  # ws (resident)
    inputs.append(p["b1"])
    in_specs.append(pl.BlockSpec((C_out, 1), lambda b, t: (0, 0)))         # b1 (resident)

    out = pl.pallas_call(
        _out_kernel_proj if has_sc else _out_kernel_identity,
        out_shape=jax.ShapeDtypeStruct((B, C_out, T), jnp.float32),
        grid=(B, num_t),
        in_specs=in_specs,
        out_specs=pl.BlockSpec((None, C_out, t_tile), lambda b, t: (b, 0, t)),
        compiler_params=cp_par,
    )(*inputs)
    return out


# ============================================================================ public wrapper

def cresnet_block_conv1d(x, c, params, *, t_tile=None, force_tiled=False):
    """x: (B, C_in, T) f32 (PyTorch NCW), c: (B, c_dim) f32. Returns (B, C_out, T) f32."""
    B, C_in, T = x.shape
    C_h = params["w0"].shape[0]
    C_out = params["w1"].shape[0]
    c_total = C_in + C_h + C_out
    # x + net + out fully resident + per-batch temps (generous 2x slack term)
    fused_bytes = 4 * T * (B + 2) * c_total
    if (not force_tiled) and fused_bytes <= FUSED_VMEM_BUDGET:
        return _forward_fused(x, c, params)
    return _forward_tiled(x, c, params, t_tile=t_tile)


# ============================================================================ reference

def ref_forward(x, c, p):
    """Pure-JAX reference of the PyTorch forward (training-mode BatchNorm, NCW layout)."""
    def cbn(h, wg, bg, wb, bb):
        gamma = c @ wg + bg
        beta = c @ wb + bb
        mean = h.mean(axis=(0, 2), keepdims=True)
        var = ((h - mean) ** 2).mean(axis=(0, 2), keepdims=True)   # biased variance
        hn = (h - mean) / jnp.sqrt(var + EPS)
        return gamma[:, :, None] * hn + beta[:, :, None]

    h0 = jax.nn.relu(cbn(x, p["wg0"], p["bg0"], p["wb0"], p["bb0"]))
    net = jnp.einsum("oc,bct->bot", p["w0"], h0) + p["b0"][None]
    h1 = jax.nn.relu(cbn(net, p["wg1"], p["bg1"], p["wb1"], p["bb1"]))
    dx = jnp.einsum("oc,bct->bot", p["w1"], h1) + p["b1"][None]
    x_s = x if p["ws"] is None else jnp.einsum("oc,bct->bot", p["ws"], x)
    return x_s + dx


def make_params(key, c_dim, size_in, size_h, size_out):
    # Deterministic small random params (exercise the full compute path; synthetic).
    ks = jax.random.split(key, 13)
    f = lambda k, shape: (0.1 * jax.random.normal(k, shape)).astype(jnp.float32)
    p = {
        "wg0": f(ks[0], (c_dim, size_in)),  "bg0": f(ks[1], (size_in,)),
        "wb0": f(ks[2], (c_dim, size_in)),  "bb0": f(ks[3], (size_in,)),
        "w0":  f(ks[4], (size_h, size_in)), "b0":  f(ks[5], (size_h, 1)),
        "wg1": f(ks[6], (c_dim, size_h)),   "bg1": f(ks[7], (size_h,)),
        "wb1": f(ks[8], (c_dim, size_h)),   "bb1": f(ks[9], (size_h,)),
        "w1":  f(ks[10], (size_out, size_h)), "b1": f(ks[11], (size_out, 1)),
    }
    # shortcut: None (identity) when size_in == size_out, else Conv1d(size_in,size_out,1,bias=False)
    p["ws"] = None if size_in == size_out else f(ks[12], (size_out, size_in))
    return p


if __name__ == "__main__":
    B, c_dim, size_in, size_h, size_out, T = 2, 8, 16, 32, 24, 256

    key = jax.random.PRNGKey(0)
    kx, kc, kp = jax.random.split(key, 3)
    x = jax.random.normal(kx, (B, size_in, T), dtype=jnp.float32)   # PyTorch NCW
    c = jax.random.normal(kc, (B, c_dim), dtype=jnp.float32)

    # --- fused single-launch path (default at these sizes) ---
    params = make_params(kp, c_dim, size_in, size_h, size_out)      # projection shortcut
    out = jax.block_until_ready(cresnet_block_conv1d(x, c, params))
    ref = ref_forward(x, c, params)
    assert out.shape == (B, size_out, T)
    assert jnp.allclose(out, ref, rtol=1e-4, atol=1e-4), "fused mismatch (projection shortcut)"

    params_id = make_params(kp, c_dim, size_in, size_h, size_in)    # identity shortcut
    out_id = jax.block_until_ready(cresnet_block_conv1d(x, c, params_id))
    ref_id = ref_forward(x, c, params_id)
    assert out_id.shape == (B, size_in, T)
    assert jnp.allclose(out_id, ref_id, rtol=1e-4, atol=1e-4), "fused mismatch (identity shortcut)"

    # --- tiled 3-pass fallback path (forced, multi-step grid) ---
    out_t = jax.block_until_ready(
        cresnet_block_conv1d(x, c, params, force_tiled=True, t_tile=128))
    assert jnp.allclose(out_t, ref, rtol=1e-4, atol=1e-4), "tiled mismatch (projection shortcut)"
    out_t_id = jax.block_until_ready(
        cresnet_block_conv1d(x, c, params_id, force_tiled=True, t_tile=128))
    assert jnp.allclose(out_t_id, ref_id, rtol=1e-4, atol=1e-4), "tiled mismatch (identity shortcut)"

    # TODO(synk): BatchNorm running-mean/var buffer updates (training-time side effect)
    # are not modeled; the forward output does not depend on them.
    print("KERNEL_OK")
</pallas_src>

<mosaic_0001>
module attributes {stable_mosaic.version = 11 : i64} {
  func.func @kernel(%arg0: i32, %arg1: memref<2x16x256xf32, #tpu.memory_space<vmem>>, %arg2: memref<16x2xf32, #tpu.memory_space<vmem>>, %arg3: memref<16x2xf32, #tpu.memory_space<vmem>>, %arg4: memref<32x16xf32, #tpu.memory_space<vmem>>, %arg5: memref<32x1xf32, #tpu.memory_space<vmem>>, %arg6: memref<32x2xf32, #tpu.memory_space<vmem>>, %arg7: memref<32x2xf32, #tpu.memory_space<vmem>>, %arg8: memref<24x32xf32, #tpu.memory_space<vmem>>, %arg9: memref<24x1xf32, #tpu.memory_space<vmem>>, %arg10: memref<24x16xf32, #tpu.memory_space<vmem>>, %arg11: memref<2x24x256xf32, #tpu.memory_space<vmem>>, %arg12: memref<2x32x256xf32, #tpu.memory_space<vmem>>) attributes {dimension_semantics = [#tpu.dimension_semantics<arbitrary>], iteration_bounds = array<i64: 1>, scalar_prefetch = 0 : i64, scratch_operands = 1 : i64, tpu.core_type = #tpu.core_type<tc>, window_params = [{pipeline_mode = #tpu.pipeline_mode<synchronous>, transform_indices = @transform_0, window_bounds = array<i64: 2, 16, 256>}, {pipeline_mode = #tpu.pipeline_mode<synchronous>, transform_indices = @transform_1, window_bounds = array<i64: 16, 2>}, {pipeline_mode = #tpu.pipeline_mode<synchronous>, transform_indices = @transform_2, window_bounds = array<i64: 16, 2>}, {pipeline_mode = #tpu.pipeline_mode<synchronous>, transform_indices = @transform_3, window_bounds = array<i64: 32, 16>}, {pipeline_mode = #tpu.pipeline_mode<synchronous>, transform_indices = @transform_4, window_bounds = array<i64: 32, 1>}, {pipeline_mode = #tpu.pipeline_mode<synchronous>, transform_indices = @transform_5, window_bounds = array<i64: 32, 2>}, {pipeline_mode = #tpu.pipeline_mode<synchronous>, transform_indices = @transform_6, window_bounds = array<i64: 32, 2>}, {pipeline_mode = #tpu.pipeline_mode<synchronous>, transform_indices = @transform_7, window_bounds = array<i64: 24, 32>}, {pipeline_mode = #tpu.pipeline_mode<synchronous>, transform_indices = @transform_8, window_bounds = array<i64: 24, 1>}, {pipeline_mode = #tpu.pipeline_mode<synchronous>, transform_indices = @transform_9, window_bounds = array<i64: 24, 16>}, {pipeline_mode = #tpu.pipeline_mode<synchronous>, transform_indices = @transform_10, window_bounds = array<i64: 2, 24, 256>}]} {
    %cst = arith.constant 0.000000e+00 : f32
    %0 = vector.broadcast %cst : f32 to vector<16x1xf32>
    %c0 = arith.constant 0 : index
    %c0_0 = arith.constant 0 : index
    %c0_1 = arith.constant 0 : index
    %1 = vector.load %arg1[%c0, %c0_0, %c0_1] : memref<2x16x256xf32, #tpu.memory_space<vmem>>, vector<1x16x256xf32>
    %2 = vector.shape_cast %1 : vector<1x16x256xf32> to vector<16x256xf32>
    %cst_2 = arith.constant dense<0.000000e+00> : vector<16xf32>
    %3 = vector.multi_reduction <add>, %2, %cst_2 [1] : vector<16x256xf32> to vector<16xf32>
    %4 = vector.shape_cast %3 : vector<16xf32> to vector<16x1xf32>
    %5 = arith.addf %0, %4 : vector<16x1xf32>
    %c1 = arith.constant 1 : index
    %c0_3 = arith.constant 0 : index
    %c0_4 = arith.constant 0 : index
    %6 = vector.load %arg1[%c1, %c0_3, %c0_4] : memref<2x16x256xf32, #tpu.memory_space<vmem>>, vector<1x16x256xf32>
    %7 = vector.shape_cast %6 : vector<1x16x256xf32> to vector<16x256xf32>
    %cst_5 = arith.constant dense<0.000000e+00> : vector<16xf32>
    %8 = vector.multi_reduction <add>, %7, %cst_5 [1] : vector<16x256xf32> to vector<16xf32>
    %9 = vector.shape_cast %8 : vector<16xf32> to vector<16x1xf32>
    %10 = arith.addf %5, %9 : vector<16x1xf32>
    %cst_6 = arith.constant 0.001953125 : f32
    %11 = vector.broadcast %cst_6 : f32 to vector<16x1xf32>
    %12 = arith.mulf %10, %11 : vector<16x1xf32>
    %cst_7 = arith.constant 0.000000e+00 : f32
    %13 = vector.broadcast %cst_7 : f32 to vector<16x1xf32>
    %c0_8 = arith.constant 0 : index
    %c0_9 = arith.constant 0 : index
    %c0_10 = arith.constant 0 : index
    %14 = vector.load %arg1[%c0_8, %c0_9, %c0_10] : memref<2x16x256xf32, #tpu.memory_space<vmem>>, vector<1x16x256xf32>
    %15 = vector.shape_cast %14 : vector<1x16x256xf32> to vector<16x256xf32>
    %16 = vector.broadcast %12 : vector<16x1xf32> to vector<16x256xf32>
    %17 = arith.subf %15, %16 : vector<16x256xf32>
    %18 = arith.mulf %17, %17 : vector<16x256xf32>
    %cst_11 = arith.constant dense<0.000000e+00> : vector<16xf32>
    %19 = vector.multi_reduction <add>, %18, %cst_11 [1] : vector<16x256xf32> to vector<16xf32>
    %20 = vector.shape_cast %19 : vector<16xf32> to vector<16x1xf32>
    %21 = arith.addf %13, %20 : vector<16x1xf32>
    %c1_12 = arith.constant 1 : index
    %c0_13 = arith.constant 0 : index
    %c0_14 = arith.constant 0 : index
    %22 = vector.load %arg1[%c1_12, %c0_13, %c0_14] : memref<2x16x256xf32, #tpu.memory_space<vmem>>, vector<1x16x256xf32>
    %23 = vector.shape_cast %22 : vector<1x16x256xf32> to vector<16x256xf32>
    %24 = vector.broadcast %12 : vector<16x1xf32> to vector<16x256xf32>
    %25 = arith.subf %23, %24 : vector<16x256xf32>
    %26 = arith.mulf %25, %25 : vector<16x256xf32>
    %cst_15 = arith.constant dense<0.000000e+00> : vector<16xf32>
    %27 = vector.multi_reduction <add>, %26, %cst_15 [1] : vector<16x256xf32> to vector<16xf32>
    %28 = vector.shape_cast %27 : vector<16xf32> to vector<16x1xf32>
    %29 = arith.addf %21, %28 : vector<16x1xf32>
    %cst_16 = arith.constant 0.001953125 : f32
    %30 = vector.broadcast %cst_16 : f32 to vector<16x1xf32>
    %31 = arith.mulf %29, %30 : vector<16x1xf32>
    %cst_17 = arith.constant 9.99999974E-6 : f32
    %32 = vector.broadcast %cst_17 : f32 to vector<16x1xf32>
    %33 = arith.addf %31, %32 : vector<16x1xf32>
    %34 = math.rsqrt %33 : vector<16x1xf32>
    %c0_18 = arith.constant 0 : index
    %c0_19 = arith.constant 0 : index
    %35 = vector.load %arg2[%c0_18, %c0_19] : memref<16x2xf32, #tpu.memory_space<vmem>>, vector<16x2xf32>
    %36 = vector.broadcast %34 : vector<16x1xf32> to vector<16x2xf32>
    %37 = arith.mulf %35, %36 : vector<16x2xf32>
    %c0_20 = arith.constant 0 : index
    %c0_21 = arith.constant 0 : index
    %38 = vector.load %arg3[%c0_20, %c0_21] : memref<16x2xf32, #tpu.memory_space<vmem>>, vector<16x2xf32>
    %39 = vector.broadcast %12 : vector<16x1xf32> to vector<16x2xf32>
    %40 = arith.mulf %37, %39 : vector<16x2xf32>
    %41 = arith.subf %38, %40 : vector<16x2xf32>
    %42 = vector.extract_strided_slice %37 {offsets = [0, 0], sizes = [16, 1], strides = [1, 1]} : vector<16x2xf32> to vector<16x1xf32>
    %c0_22 = arith.constant 0 : index
    %c0_23 = arith.constant 0 : index
    %c0_24 = arith.constant 0 : index
    %43 = vector.load %arg1[%c0_22, %c0_23, %c0_24] : memref<2x16x256xf32, #tpu.memory_space<vmem>>, vector<1x16x256xf32>
    %44 = vector.shape_cast %43 : vector<1x16x256xf32> to vector<16x256xf32>
    %45 = vector.broadcast %42 : vector<16x1xf32> to vector<16x256xf32>
    %46 = arith.mulf %45, %44 : vector<16x256xf32>
    %47 = vector.extract_strided_slice %41 {offsets = [0, 0], sizes = [16, 1], strides = [1, 1]} : vector<16x2xf32> to vector<16x1xf32>
    %48 = vector.broadcast %47 : vector<16x1xf32> to vector<16x256xf32>
    %49 = arith.addf %46, %48 : vector<16x256xf32>
    %cst_25 = arith.constant 0.000000e+00 : f32
    %50 = vector.broadcast %cst_25 : f32 to vector<16x256xf32>
    %51 = arith.maximumf %49, %50 : vector<16x256xf32>
    %c0_26 = arith.constant 0 : index
    %c0_27 = arith.constant 0 : index
    %52 = vector.load %arg4[%c0_26, %c0_27] : memref<32x16xf32, #tpu.memory_space<vmem>>, vector<32x16xf32>
    %cst_28 = arith.constant dense<0.000000e+00> : vector<32x256xf32>
    %53 = tpu.matmul %52, %51, %cst_28 {dimension_numbers = #tpu.dot_dimension_numbers<[1], [0], [0], [1], [0, 0, 1, 1], [], []>} : vector<32x16xf32>, vector<16x256xf32>, vector<32x256xf32> -> vector<32x256xf32>
    %c0_29 = arith.constant 0 : index
    %c0_30 = arith.constant 0 : index
    %54 = vector.load %arg5[%c0_29, %c0_30] : memref<32x1xf32, #tpu.memory_space<vmem>>, vector<32x1xf32>
    %55 = vector.broadcast %54 : vector<32x1xf32> to vector<32x256xf32>
    %56 = arith.addf %53, %55 : vector<32x256xf32>
    %c0_31 = arith.constant 0 : index
    %c0_32 = arith.constant 0 : index
    %c0_33 = arith.constant 0 : index
    %57 = vector.load %arg12[%c0_31, %c0_32, %c0_33] : memref<2x32x256xf32, #tpu.memory_space<vmem>>, vector<1x32x256xf32>
    %58 = vector.shape_cast %57 : vector<1x32x256xf32> to vector<32x256xf32>
    %59 = vector.shape_cast %56 : vector<32x256xf32> to vector<1x32x256xf32>
    tpu.vector_store %arg12[%c0_31, %c0_32, %c0_33], %59 {strides = array<i32>} : memref<2x32x256xf32, #tpu.memory_space<vmem>>, vector<1x32x256xf32>,
    %60 = vector.extract_strided_slice %37 {offsets = [0, 1], sizes = [16, 1], strides = [1, 1]} : vector<16x2xf32> to vector<16x1xf32>
    %c1_34 = arith.constant 1 : index
    %c0_35 = arith.constant 0 : index
    %c0_36 = arith.constant 0 : index
    %61 = vector.load %arg1[%c1_34, %c0_35, %c0_36] : memref<2x16x256xf32, #tpu.memory_space<vmem>>, vector<1x16x256xf32>
    %62 = vector.shape_cast %61 : vector<1x16x256xf32> to vector<16x256xf32>
    %63 = vector.broadcast %60 : vector<16x1xf32> to vector<16x256xf32>
    %64 = arith.mulf %63, %62 : vector<16x256xf32>
    %65 = vector.extract_strided_slice %41 {offsets = [0, 1], sizes = [16, 1], strides = [1, 1]} : vector<16x2xf32> to vector<16x1xf32>
    %66 = vector.broadcast %65 : vector<16x1xf32> to vector<16x256xf32>
    %67 = arith.addf %64, %66 : vector<16x256xf32>
    %cst_37 = arith.constant 0.000000e+00 : f32
    %68 = vector.broadcast %cst_37 : f32 to vector<16x256xf32>
    %69 = arith.maximumf %67, %68 : vector<16x256xf32>
    %c0_38 = arith.constant 0 : index
    %c0_39 = arith.constant 0 : index
    %70 = vector.load %arg4[%c0_38, %c0_39] : memref<32x16xf32, #tpu.memory_space<vmem>>, vector<32x16xf32>
    %cst_40 = arith.constant dense<0.000000e+00> : vector<32x256xf32>
    %71 = tpu.matmul %70, %69, %cst_40 {dimension_numbers = #tpu.dot_dimension_numbers<[1], [0], [0], [1], [0, 0, 1, 1], [], []>} : vector<32x16xf32>, vector<16x256xf32>, vector<32x256xf32> -> vector<32x256xf32>
    %c0_41 = arith.constant 0 : index
    %c0_42 = arith.constant 0 : index
    %72 = vector.load %arg5[%c0_41, %c0_42] : memref<32x1xf32, #tpu.memory_space<vmem>>, vector<32x1xf32>
    %73 = vector.broadcast %72 : vector<32x1xf32> to vector<32x256xf32>
    %74 = arith.addf %71, %73 : vector<32x256xf32>
    %c1_43 = arith.constant 1 : index
    %c0_44 = arith.constant 0 : index
    %c0_45 = arith.constant 0 : index
    %75 = vector.load %arg12[%c1_43, %c0_44, %c0_45] : memref<2x32x256xf32, #tpu.memory_space<vmem>>, vector<1x32x256xf32>
    %76 = vector.shape_cast %75 : vector<1x32x256xf32> to vector<32x256xf32>
    %77 = vector.shape_cast %74 : vector<32x256xf32> to vector<1x32x256xf32>
    tpu.vector_store %arg12[%c1_43, %c0_44, %c0_45], %77 {strides = array<i32>} : memref<2x32x256xf32, #tpu.memory_space<vmem>>, vector<1x32x256xf32>,
    %cst_46 = arith.constant 0.000000e+00 : f32
    %78 = vector.broadcast %cst_46 : f32 to vector<32x1xf32>
    %c0_47 = arith.constant 0 : index
    %c0_48 = arith.constant 0 : index
    %c0_49 = arith.constant 0 : index
    %79 = vector.load %arg12[%c0_47, %c0_48, %c0_49] : memref<2x32x256xf32, #tpu.memory_space<vmem>>, vector<1x32x256xf32>
    %80 = vector.shape_cast %79 : vector<1x32x256xf32> to vector<32x256xf32>
    %cst_50 = arith.constant dense<0.000000e+00> : vector<32xf32>
    %81 = vector.multi_reduction <add>, %80, %cst_50 [1] : vector<32x256xf32> to vector<32xf32>
    %82 = vector.shape_cast %81 : vector<32xf32> to vector<32x1xf32>
    %83 = arith.addf %78, %82 : vector<32x1xf32>
    %c1_51 = arith.constant 1 : index
    %c0_52 = arith.constant 0 : index
    %c0_53 = arith.constant 0 : index
    %84 = vector.load %arg12[%c1_51, %c0_52, %c0_53] : memref<2x32x256xf32, #tpu.memory_space<vmem>>, vector<1x32x256xf32>
    %85 = vector.shape_cast %84 : vector<1x32x256xf32> to vector<32x256xf32>
    %cst_54 = arith.constant dense<0.000000e+00> : vector<32xf32>
    %86 = vector.multi_reduction <add>, %85, %cst_54 [1] : vector<32x256xf32> to vector<32xf32>
    %87 = vector.shape_cast %86 : vector<32xf32> to vector<32x1xf32>
    %88 = arith.addf %83, %87 : vector<32x1xf32>
    %cst_55 = arith.constant 0.001953125 : f32
    %89 = vector.broadcast %cst_55 : f32 to vector<32x1xf32>
    %90 = arith.mulf %88, %89 : vector<32x1xf32>
    %cst_56 = arith.constant 0.000000e+00 : f32
    %91 = vector.broadcast %cst_56 : f32 to vector<32x1xf32>
    %c0_57 = arith.constant 0 : index
    %c0_58 = arith.constant 0 : index
    %c0_59 = arith.constant 0 : index
    %92 = vector.load %arg12[%c0_57, %c0_58, %c0_59] : memref<2x32x256xf32, #tpu.memory_space<vmem>>, vector<1x32x256xf32>
    %93 = vector.shape_cast %92 : vector<1x32x256xf32> to vector<32x256xf32>
    %94 = vector.broadcast %90 : vector<32x1xf32> to vector<32x256xf32>
    %95 = arith.subf %93, %94 : vector<32x256xf32>
    %96 = arith.mulf %95, %95 : vector<32x256xf32>
    %cst_60 = arith.constant dense<0.000000e+00> : vector<32xf32>
    %97 = vector.multi_reduction <add>, %96, %cst_60 [1] : vector<32x256xf32> to vector<32xf32>
    %98 = vector.shape_cast %97 : vector<32xf32> to vector<32x1xf32>
    %99 = arith.addf %91, %98 : vector<32x1xf32>
    %c1_61 = arith.constant 1 : index
    %c0_62 = arith.constant 0 : index
    %c0_63 = arith.constant 0 : index
    %100 = vector.load %arg12[%c1_61, %c0_62, %c0_63] : memref<2x32x256xf32, #tpu.memory_space<vmem>>, vector<1x32x256xf32>
    %101 = vector.shape_cast %100 : vector<1x32x256xf32> to vector<32x256xf32>
    %102 = vector.broadcast %90 : vector<32x1xf32> to vector<32x256xf32>
    %103 = arith.subf %101, %102 : vector<32x256xf32>
    %104 = arith.mulf %103, %103 : vector<32x256xf32>
    %cst_64 = arith.constant dense<0.000000e+00> : vector<32xf32>
    %105 = vector.multi_reduction <add>, %104, %cst_64 [1] : vector<32x256xf32> to vector<32xf32>
    %106 = vector.shape_cast %105 : vector<32xf32> to vector<32x1xf32>
    %107 = arith.addf %99, %106 : vector<32x1xf32>
    %cst_65 = arith.constant 0.001953125 : f32
    %108 = vector.broadcast %cst_65 : f32 to vector<32x1xf32>
    %109 = arith.mulf %107, %108 : vector<32x1xf32>
    %cst_66 = arith.constant 9.99999974E-6 : f32
    %110 = vector.broadcast %cst_66 : f32 to vector<32x1xf32>
    %111 = arith.addf %109, %110 : vector<32x1xf32>
    %112 = math.rsqrt %111 : vector<32x1xf32>
    %c0_67 = arith.constant 0 : index
    %c0_68 = arith.constant 0 : index
    %113 = vector.load %arg6[%c0_67, %c0_68] : memref<32x2xf32, #tpu.memory_space<vmem>>, vector<32x2xf32>
    %114 = vector.broadcast %112 : vector<32x1xf32> to vector<32x2xf32>
    %115 = arith.mulf %113, %114 : vector<32x2xf32>
    %c0_69 = arith.constant 0 : index
    %c0_70 = arith.constant 0 : index
    %116 = vector.load %arg7[%c0_69, %c0_70] : memref<32x2xf32, #tpu.memory_space<vmem>>, vector<32x2xf32>
    %117 = vector.broadcast %90 : vector<32x1xf32> to vector<32x2xf32>
    %118 = arith.mulf %115, %117 : vector<32x2xf32>
    %119 = arith.subf %116, %118 : vector<32x2xf32>
    %120 = vector.extract_strided_slice %115 {offsets = [0, 0], sizes = [32, 1], strides = [1, 1]} : vector<32x2xf32> to vector<32x1xf32>
    %c0_71 = arith.constant 0 : index
    %c0_72 = arith.constant 0 : index
    %c0_73 = arith.constant 0 : index
    %121 = vector.load %arg12[%c0_71, %c0_72, %c0_73] : memref<2x32x256xf32, #tpu.memory_space<vmem>>, vector<1x32x256xf32>
    %122 = vector.shape_cast %121 : vector<1x32x256xf32> to vector<32x256xf32>
    %123 = vector.broadcast %120 : vector<32x1xf32> to vector<32x256xf32>
    %124 = arith.mulf %123, %122 : vector<32x256xf32>
    %125 = vector.extract_strided_slice %119 {offsets = [0, 0], sizes = [32, 1], strides = [1, 1]} : vector<32x2xf32> to vector<32x1xf32>
    %126 = vector.broadcast %125 : vector<32x1xf32> to vector<32x256xf32>
    %127 = arith.addf %124, %126 : vector<32x256xf32>
    %cst_74 = arith.constant 0.000000e+00 : f32
    %128 = vector.broadcast %cst_74 : f32 to vector<32x256xf32>
    %129 = arith.maximumf %127, %128 : vector<32x256xf32>
    %c0_75 = arith.constant 0 : index
    %c0_76 = arith.constant 0 : index
    %130 = vector.load %arg8[%c0_75, %c0_76] : memref<24x32xf32, #tpu.memory_space<vmem>>, vector<24x32xf32>
    %cst_77 = arith.constant dense<0.000000e+00> : vector<24x256xf32>
    %131 = tpu.matmul %130, %129, %cst_77 {dimension_numbers = #tpu.dot_dimension_numbers<[1], [0], [0], [1], [0, 0, 1, 1], [], []>} : vector<24x32xf32>, vector<32x256xf32>, vector<24x256xf32> -> vector<24x256xf32>
    %c0_78 = arith.constant 0 : index
    %c0_79 = arith.constant 0 : index
    %132 = vector.load %arg9[%c0_78, %c0_79] : memref<24x1xf32, #tpu.memory_space<vmem>>, vector<24x1xf32>
    %133 = vector.broadcast %132 : vector<24x1xf32> to vector<24x256xf32>
    %134 = arith.addf %131, %133 : vector<24x256xf32>
    %c0_80 = arith.constant 0 : index
    %c0_81 = arith.constant 0 : index
    %135 = vector.load %arg10[%c0_80, %c0_81] : memref<24x16xf32, #tpu.memory_space<vmem>>, vector<24x16xf32>
    %c0_82 = arith.constant 0 : index
    %c0_83 = arith.constant 0 : index
    %c0_84 = arith.constant 0 : index
    %136 = vector.load %arg1[%c0_82, %c0_83, %c0_84] : memref<2x16x256xf32, #tpu.memory_space<vmem>>, vector<1x16x256xf32>
    %137 = vector.shape_cast %136 : vector<1x16x256xf32> to vector<16x256xf32>
    %cst_85 = arith.constant dense<0.000000e+00> : vector<24x256xf32>
    %138 = tpu.matmul %135, %137, %cst_85 {dimension_numbers = #tpu.dot_dimension_numbers<[1], [0], [0], [1], [0, 0, 1, 1], [], []>} : vector<24x16xf32>, vector<16x256xf32>, vector<24x256xf32> -> vector<24x256xf32>
    %139 = arith.addf %138, %134 : vector<24x256xf32>
    %c0_86 = arith.constant 0 : index
    %c0_87 = arith.constant 0 : index
    %c0_88 = arith.constant 0 : index
    %140 = vector.load %arg11[%c0_86, %c0_87, %c0_88] : memref<2x24x256xf32, #tpu.memory_space<vmem>>, vector<1x24x256xf32>
    %141 = vector.shape_cast %140 : vector<1x24x256xf32> to vector<24x256xf32>
    %142 = vector.shape_cast %139 : vector<24x256xf32> to vector<1x24x256xf32>
    tpu.vector_store %arg11[%c0_86, %c0_87, %c0_88], %142 {strides = array<i32>} : memref<2x24x256xf32, #tpu.memory_space<vmem>>, vector<1x24x256xf32>,
    %143 = vector.extract_strided_slice %115 {offsets = [0, 1], sizes = [32, 1], strides = [1, 1]} : vector<32x2xf32> to vector<32x1xf32>
    %c1_89 = arith.constant 1 : index
    %c0_90 = arith.constant 0 : index
    %c0_91 = arith.constant 0 : index
    %144 = vector.load %arg12[%c1_89, %c0_90, %c0_91] : memref<2x32x256xf32, #tpu.memory_space<vmem>>, vector<1x32x256xf32>
    %145 = vector.shape_cast %144 : vector<1x32x256xf32> to vector<32x256xf32>
    %146 = vector.broadcast %143 : vector<32x1xf32> to vector<32x256xf32>
    %147 = arith.mulf %146, %145 : vector<32x256xf32>
    %148 = vector.extract_strided_slice %119 {offsets = [0, 1], sizes = [32, 1], strides = [1, 1]} : vector<32x2xf32> to vector<32x1xf32>
    %149 = vector.broadcast %148 : vector<32x1xf32> to vector<32x256xf32>
    %150 = arith.addf %147, %149 : vector<32x256xf32>
    %cst_92 = arith.constant 0.000000e+00 : f32
    %151 = vector.broadcast %cst_92 : f32 to vector<32x256xf32>
    %152 = arith.maximumf %150, %151 : vector<32x256xf32>
    %c0_93 = arith.constant 0 : index
    %c0_94 = arith.constant 0 : index
    %153 = vector.load %arg8[%c0_93, %c0_94] : memref<24x32xf32, #tpu.memory_space<vmem>>, vector<24x32xf32>
    %cst_95 = arith.constant dense<0.000000e+00> : vector<24x256xf32>
    %154 = tpu.matmul %153, %152, %cst_95 {dimension_numbers = #tpu.dot_dimension_numbers<[1], [0], [0], [1], [0, 0, 1, 1], [], []>} : vector<24x32xf32>, vector<32x256xf32>, vector<24x256xf32> -> vector<24x256xf32>
    %c0_96 = arith.constant 0 : index
    %c0_97 = arith.constant 0 : index
    %155 = vector.load %arg9[%c0_96, %c0_97] : memref<24x1xf32, #tpu.memory_space<vmem>>, vector<24x1xf32>
    %156 = vector.broadcast %155 : vector<24x1xf32> to vector<24x256xf32>
    %157 = arith.addf %154, %156 : vector<24x256xf32>
    %c0_98 = arith.constant 0 : index
    %c0_99 = arith.constant 0 : index
    %158 = vector.load %arg10[%c0_98, %c0_99] : memref<24x16xf32, #tpu.memory_space<vmem>>, vector<24x16xf32>
    %c1_100 = arith.constant 1 : index
    %c0_101 = arith.constant 0 : index
    %c0_102 = arith.constant 0 : index
    %159 = vector.load %arg1[%c1_100, %c0_101, %c0_102] : memref<2x16x256xf32, #tpu.memory_space<vmem>>, vector<1x16x256xf32>
    %160 = vector.shape_cast %159 : vector<1x16x256xf32> to vector<16x256xf32>
    %cst_103 = arith.constant dense<0.000000e+00> : vector<24x256xf32>
    %161 = tpu.matmul %158, %160, %cst_103 {dimension_numbers = #tpu.dot_dimension_numbers<[1], [0], [0], [1], [0, 0, 1, 1], [], []>} : vector<24x16xf32>, vector<16x256xf32>, vector<24x256xf32> -> vector<24x256xf32>
    %162 = arith.addf %161, %157 : vector<24x256xf32>
    %c1_104 = arith.constant 1 : index
    %c0_105 = arith.constant 0 : index
    %c0_106 = arith.constant 0 : index
    %163 = vector.load %arg11[%c1_104, %c0_105, %c0_106] : memref<2x24x256xf32, #tpu.memory_space<vmem>>, vector<1x24x256xf32>
    %164 = vector.shape_cast %163 : vector<1x24x256xf32> to vector<24x256xf32>
    %165 = vector.shape_cast %162 : vector<24x256xf32> to vector<1x24x256xf32>
    tpu.vector_store %arg11[%c1_104, %c0_105, %c0_106], %165 {strides = array<i32>} : memref<2x24x256xf32, #tpu.memory_space<vmem>>, vector<1x24x256xf32>,
    return
  }
  func.func @transform_0(%arg0: i32) -> (i32, i32, i32) {
    %c0_i32 = arith.constant 0 : i32
    %c0_i32_0 = arith.constant 0 : i32
    %c0_i32_1 = arith.constant 0 : i32
    %c0_i32_2 = arith.constant 0 : i32
    return %c0_i32, %c0_i32_0, %c0_i32_1 : i32, i32, i32
  }
  func.func @transform_1(%arg0: i32) -> (i32, i32) {
    %c0_i32 = arith.constant 0 : i32
    %c0_i32_0 = arith.constant 0 : i32
    %c0_i32_1 = arith.constant 0 : i32
    return %c0_i32, %c0_i32_0 : i32, i32
  }
  func.func @transform_2(%arg0: i32) -> (i32, i32) {
    %c0_i32 = arith.constant 0 : i32
    %c0_i32_0 = arith.constant 0 : i32
    %c0_i32_1 = arith.constant 0 : i32
    return %c0_i32, %c0_i32_0 : i32, i32
  }
  func.func @transform_3(%arg0: i32) -> (i32, i32) {
    %c0_i32 = arith.constant 0 : i32
    %c0_i32_0 = arith.constant 0 : i32
    %c0_i32_1 = arith.constant 0 : i32
    return %c0_i32, %c0_i32_0 : i32, i32
  }
  func.func @transform_4(%arg0: i32) -> (i32, i32) {
    %c0_i32 = arith.constant 0 : i32
    %c0_i32_0 = arith.constant 0 : i32
    %c0_i32_1 = arith.constant 0 : i32
    return %c0_i32, %c0_i32_0 : i32, i32
  }
  func.func @transform_5(%arg0: i32) -> (i32, i32) {
    %c0_i32 = arith.constant 0 : i32
    %c0_i32_0 = arith.constant 0 : i32
    %c0_i32_1 = arith.constant 0 : i32
    return %c0_i32, %c0_i32_0 : i32, i32
  }
  func.func @transform_6(%arg0: i32) -> (i32, i32) {
    %c0_i32 = arith.constant 0 : i32
    %c0_i32_0 = arith.constant 0 : i32
    %c0_i32_1 = arith.constant 0 : i32
    return %c0_i32, %c0_i32_0 : i32, i32
  }
  func.func @transform_7(%arg0: i32) -> (i32, i32) {
    %c0_i32 = arith.constant 0 : i32
    %c0_i32_0 = arith.constant 0 : i32
    %c0_i32_1 = arith.constant 0 : i32
    return %c0_i32, %c0_i32_0 : i32, i32
  }
  func.func @transform_8(%arg0: i32) -> (i32, i32) {
    %c0_i32 = arith.constant 0 : i32
    %c0_i32_0 = arith.constant 0 : i32
    %c0_i32_1 = arith.constant 0 : i32
    return %c0_i32, %c0_i32_0 : i32, i32
  }
  func.func @transform_9(%arg0: i32) -> (i32, i32) {
    %c0_i32 = arith.constant 0 : i32
    %c0_i32_0 = arith.constant 0 : i32
    %c0_i32_1 = arith.constant 0 : i32
    return %c0_i32, %c0_i32_0 : i32, i32
  }
  func.func @transform_10(%arg0: i32) -> (i32, i32, i32) {
    %c0_i32 = arith.constant 0 : i32
    %c0_i32_0 = arith.constant 0 : i32
    %c0_i32_1 = arith.constant 0 : i32
    %c0_i32_2 = arith.constant 0 : i32
    return %c0_i32, %c0_i32_0, %c0_i32_1 : i32, i32, i32
  }
}

</mosaic_0001>

<llo_original>
// kernel: tpu_custom_call.1
$region0: #{tpu_custom_call.1}
  #allocation0 [shape = 'u32[]', space=smem, size = 0x4, offset = 0x4, fixed_abs, tag = 'smem constant byte address 0x4 - core index']
  #allocation1 [shape = 'u32[144,128]{1,0:T(1,128)}', space=vmem, size = 0x12000, scoped, tag = 'internal scratch']
  #allocation2 [shape = 'f32[2,32,256]{2,1,0:T(8,128)}', space=vmem, size = 0x10000, scoped, tag = 'scratch operand']
  %s0 = inlined_call_operand.vmem [shape: f32[2,16,256], index: 0, kind: input, shape index: {}]
  %s1 = inlined_call_operand.vmem [shape: f32[16,2], index: 1, kind: input, shape index: {}]
  %s2 = inlined_call_operand.vmem [shape: f32[16,2], index: 2, kind: input, shape index: {}]
  %s3 = inlined_call_operand.vmem [shape: f32[32,16], index: 3, kind: input, shape index: {}]
  %s4 = inlined_call_operand.vmem [shape: f32[32,1], index: 4, kind: input, shape index: {}]
  %s5 = inlined_call_operand.vmem [shape: f32[32,2], index: 5, kind: input, shape index: {}]
  %s6 = inlined_call_operand.vmem [shape: f32[32,2], index: 6, kind: input, shape index: {}]
  %s7 = inlined_call_operand.vmem [shape: f32[24,32], index: 7, kind: input, shape index: {}]
  %s8 = inlined_call_operand.vmem [shape: f32[24,1], index: 8, kind: input, shape index: {}]
  %s9 = inlined_call_operand.vmem [shape: f32[24,16], index: 9, kind: input, shape index: {}]
  %s10 = inlined_call_operand.hbm [shape: f32[2,24,256], index: 10, kind: output, shape index: {}]
  %s11 = sld [smem:[#allocation0]]
  $region50: #{tpu_custom_call.1} parent=0
    _
  %s13 = ssub.s32 1, %s11
  %s14 = scalar_select 0, %s13, %s11
  $region1: #{tpu_custom_call.1} parent=0
    #allocation3 [shape = 'u8[49152]{0}', space=vmem, size = 0xc000, scoped, tag = 'output window, operand 0, single buffered']
    #allocation4 [shape = 's32[1]{0}', space=sflag, size = 0x4, scoped, tag = 'scoped memory for tpu_custom_call.1']
    %15 = vsyncpa [#allocation4], 0
    // Predicated region
    $region2: #{tpu_custom_call.1} parent=1 // pred_check
      _
    $region3: #{tpu_custom_call.1} parent=1 // pred_check_branch
      %17 = sbr.rel (0) target = $region5
    $region4: #{tpu_custom_call.1} parent=1 // pred_region
      _
    $region5: #{tpu_custom_call.1} parent=1 // pred_fallthru
      _
    // Predicated region
    $region6: #{tpu_custom_call.1} parent=1 // pred_check
      _
    $region7: #{tpu_custom_call.1} parent=1 // pred_check_branch
      %19 = sbr.rel (0) target = $region9
    $region8: #{tpu_custom_call.1} parent=1 // pred_region
      _
    $region9: #{tpu_custom_call.1} parent=1 // pred_fallthru
      _
    // Predicated region
    $region10: #{tpu_custom_call.1} parent=1 // pred_check
      _
    $region11: #{tpu_custom_call.1} parent=1 // pred_check_branch
      %21 = sbr.rel (0) target = $region13
    $region12: #{tpu_custom_call.1} parent=1 // pred_region
      _
    $region13: #{tpu_custom_call.1} parent=1 // pred_fallthru
      _
    // Predicated region
    $region14: #{tpu_custom_call.1} parent=1 // pred_check
      _
    $region15: #{tpu_custom_call.1} parent=1 // pred_check_branch
      %23 = sbr.rel (0) target = $region17
    $region16: #{tpu_custom_call.1} parent=1 // pred_region
      _
    $region17: #{tpu_custom_call.1} parent=1 // pred_fallthru
      _
    // Predicated region
    $region18: #{tpu_custom_call.1} parent=1 // pred_check
      _
    $region19: #{tpu_custom_call.1} parent=1 // pred_check_branch
      %25 = sbr.rel (0) target = $region21
    $region20: #{tpu_custom_call.1} parent=1 // pred_region
      _
    $region21: #{tpu_custom_call.1} parent=1 // pred_fallthru
      _
    // Predicated region
    $region22: #{tpu_custom_call.1} parent=1 // pred_check
      _
    $region23: #{tpu_custom_call.1} parent=1 // pred_check_branch
      %27 = sbr.rel (0) target = $region25
    $region24: #{tpu_custom_call.1} parent=1 // pred_region
      _
    $region25: #{tpu_custom_call.1} parent=1 // pred_fallthru
      _
    // Predicated region
    $region26: #{tpu_custom_call.1} parent=1 // pred_check
      _
    $region27: #{tpu_custom_call.1} parent=1 // pred_check_branch
      %29 = sbr.rel (0) target = $region29
    $region28: #{tpu_custom_call.1} parent=1 // pred_region
      _
    $region29: #{tpu_custom_call.1} parent=1 // pred_fallthru
      _
    // Predicated region
    $region30: #{tpu_custom_call.1} parent=1 // pred_check
      _
    $region31: #{tpu_custom_call.1} parent=1 // pred_check_branch
      %31 = sbr.rel (0) target = $region33
    $region32: #{tpu_custom_call.1} parent=1 // pred_region
      _
    $region33: #{tpu_custom_call.1} parent=1 // pred_fallthru
      _
    // Predicated region
    $region34: #{tpu_custom_call.1} parent=1 // pred_check
      _
    $region35: #{tpu_custom_call.1} parent=1 // pred_check_branch
      %33 = sbr.rel (0) target = $region37
    $region36: #{tpu_custom_call.1} parent=1 // pred_region
      _
    $region37: #{tpu_custom_call.1} parent=1 // pred_fallthru
      _
    // Predicated region
    $region38: #{tpu_custom_call.1} parent=1 // pred_check
      _
    $region39: #{tpu_custom_call.1} parent=1 // pred_check_branch
      %35 = sbr.rel (0) target = $region41
    $region40: #{tpu_custom_call.1} parent=1 // pred_region
      _
    $region41: #{tpu_custom_call.1} parent=1 // pred_fallthru
      _
    %v36 = vld [vmem:[%s0] sm:$0xff]
    %v37 = vld [vmem:[%s0 + $0x8] sm:$0xff]
    %v38 = vld [vmem:[%s0 + $0x10] sm:$0xff]
    %v39 = vld [vmem:[%s0 + $0x18] sm:$0xff]
    %v40 = vadd.f32 %v36, %v37
    %41 = vadd.xlane.f32.xlu0 %v40
    %v42 = vpop.xlane.xlu0 %41
    %v43 = vadd.f32 %v38, %v39
    %44 = vadd.xlane.f32.xlu0 %v43
    %v45 = vpop.xlane.xlu0 %44
    %v46 = vadd.f32 %v42, 0.0
    %v47 = vadd.f32 %v45, 0.0
    %s48 = scalar_lea.vmem %s0, 32
    %v49 = vld [vmem:[%s48] sm:$0xff]
    %v50 = vld [vmem:[%s48 + $0x8] sm:$0xff]
    %v51 = vld [vmem:[%s48 + $0x10] sm:$0xff]
    %v52 = vld [vmem:[%s48 + $0x18] sm:$0xff]
    %v53 = vadd.f32 %v49, %v50
    %54 = vadd.xlane.f32.xlu0 %v53
    %v55 = vpop.xlane.xlu0 %54
    %v56 = vadd.f32 %v51, %v52
    %57 = vadd.xlane.f32.xlu0 %v56
    %v58 = vpop.xlane.xlu0 %57
    %v59 = vadd.f32 %v46, %v55
    %v60 = vadd.f32 %v47, %v58
    %v61 = vmul.f32 %v59, 0.001953125
    %v62 = vmul.f32 %v60, 0.001953125
    %v63 = vsub.f32 %v36, %v61
    %v64 = vsub.f32 %v37, %v61
    %v65 = vsub.f32 %v38, %v62
    %v66 = vsub.f32 %v39, %v62
    %v67 = vmul.f32 %v63, %v63
    %v68 = vmul.f32 %v64, %v64
    %v69 = vmul.f32 %v65, %v65
    %v70 = vmul.f32 %v66, %v66
    %v71 = vadd.f32 %v67, %v68
    %72 = vadd.xlane.f32.xlu0 %v71
    %v73 = vpop.xlane.xlu0 %72
    %v74 = vadd.f32 %v69, %v70
    %75 = vadd.xlane.f32.xlu0 %v74
    %v76 = vpop.xlane.xlu0 %75
    %v77 = vadd.f32 %v73, 0.0
    %v78 = vadd.f32 %v76, 0.0
    %v79 = vsub.f32 %v49, %v61
    %v80 = vsub.f32 %v50, %v61
    %v81 = vsub.f32 %v51, %v62
    %v82 = vsub.f32 %v52, %v62
    %v83 = vmul.f32 %v79, %v79
    %v84 = vmul.f32 %v80, %v80
    %v85 = vmul.f32 %v81, %v81
    %v86 = vmul.f32 %v82, %v82
    %v87 = vadd.f32 %v83, %v84
    %88 = vadd.xlane.f32.xlu0 %v87
    %v89 = vpop.xlane.xlu0 %88
    %v90 = vadd.f32 %v85, %v86
    %91 = vadd.xlane.f32.xlu0 %v90
    %v92 = vpop.xlane.xlu0 %91
    %v93 = vadd.f32 %v77, %v89
    %v94 = vadd.f32 %v78, %v92
    %v95 = vmul.f32 %v93, 0.001953125
    %v96 = vmul.f32 %v94, 0.001953125
    %v97 = vadd.f32 %v95, 1e-05
    %v98 = vadd.f32 %v96, 1e-05
    %v99 = vrsqrt.pop %v97
    %v100 = vrsqrt.pop %v98
    %v101 = vld [vmem:[%s1] sm:$0xff]
    %v102 = vld [vmem:[%s1 + $0x8] sm:$0xff]
    %v103 = vmul.f32 %v101, %v99
    %v104 = vmul.f32 %v102, %v100
    %v105 = vld [vmem:[%s2] sm:$0xff]
    %v106 = vld [vmem:[%s2 + $0x8] sm:$0xff]
    %v107 = vmul.f32 %v103, %v61
    %v108 = vmul.f32 %v104, %v62
    %v109 = vsub.f32 %v105, %v107
    %v110 = vsub.f32 %v106, %v108
    %112 = vset.pattern.permute.xlu0 0
    %113 = vperm.xlu0 %112, %v103
    %v114 = vpop.permute.xlu0 %113
    %117 = vset.pattern.permute.xlu0 0
    %118 = vperm.xlu0 %117, %v104
    %v119 = vpop.permute.xlu0 %118
    %v121 = vmul.f32 %v114, %v36
    %v122 = vmul.f32 %v114, %v37
    %v123 = vmul.f32 %v119, %v38
    %v124 = vmul.f32 %v119, %v39
    %126 = vset.pattern.permute.xlu0 0
    %127 = vperm.xlu0 %126, %v109
    %v128 = vpop.permute.xlu0 %127
    %131 = vset.pattern.permute.xlu0 0
    %132 = vperm.xlu0 %131, %v110
    %v133 = vpop.permute.xlu0 %132
    %v135 = vadd.f32 %v121, %v128
    %v136 = vadd.f32 %v122, %v128
    %v137 = vadd.f32 %v123, %v133
    %v138 = vadd.f32 %v124, %v133
    %v139 = vmax.f32 %v135, 0.0
    %v140 = vmax.f32 %v136, 0.0
    %v141 = vmax.f32 %v137, 0.0
    %v142 = vmax.f32 %v138, 0.0
    %v143 = vld [vmem:[%s3] sm:$0xff]
    %v144 = vld [vmem:[%s3 + $0x8] sm:$0xff]
    %v145 = vld [vmem:[%s3 + $0x10] sm:$0xff]
    %v146 = vld [vmem:[%s3 + $0x18] sm:$0xff]
    %v147 = vld [vmem:[%s4] sm:$0xff]
    %v148 = vld [vmem:[%s4 + $0x8] sm:$0xff]
    %v149 = vld [vmem:[%s4 + $0x10] sm:$0xff]
    %v150 = vld [vmem:[%s4 + $0x18] sm:$0xff]
    %152 = vset.pattern.permute.xlu0 0
    %153 = vperm.xlu0 %152, %v147
    %v154 = vpop.permute.xlu0 %153
    %157 = vset.pattern.permute.xlu0 0
    %158 = vperm.xlu0 %157, %v148
    %v159 = vpop.permute.xlu0 %158
    %162 = vset.pattern.permute.xlu0 0
    %163 = vperm.xlu0 %162, %v149
    %v164 = vpop.permute.xlu0 %163
    %167 = vset.pattern.permute.xlu0 0
    %168 = vperm.xlu0 %167, %v150
    %v169 = vpop.permute.xlu0 %168
    %vm171 = vcmask 130048
    %v173 = vsel %vm171, %v143, 0
    %v176 = vsel %vm171, %v144, 0
    %v179 = vsel %vm171, %v145, 0
    %v182 = vsel %vm171, %v146, 0
    %184 = vmatprep.subr.mxu0 0.0
    %185 = vmatpush1.msra.mxu0 0.0
    %186 = vmatprep.subr.mxu0 0.0
    %187 = vmatpush1.msra.mxu0 0.0
    %188 = vmatprep.subr.mxu0 0.0
    %189 = vmatpush1.msra.mxu0 0.0
    %190 = vmatprep.subr.mxu0 0.0
    %191 = vmatpush1.msra.mxu0 0.0
    %192 = vmatprep.subr.mxu0 0.0
    %193 = vmatpush1.msra.mxu0 0.0
    %194 = vmatprep.subr.mxu0 0.0
    %195 = vmatpush1.msra.mxu0 0.0
    %196 = vmatprep.subr.mxu0 0.0
    %197 = vmatpush1.msra.mxu0 0.0
    %198 = vmatprep.subr.mxu0 0.0
    %199 = vmatpush1.msra.mxu0 0.0
    %200 = vmatprep.subr.mxu0 0.0
    %201 = vmatpush1.msra.mxu0 0.0
    %202 = vmatprep.subr.mxu0 0.0
    %203 = vmatpush1.msra.mxu0 0.0
    %204 = vmatprep.subr.mxu0 0.0
    %205 = vmatpush1.msra.mxu0 0.0
    %206 = vmatprep.subr.mxu0 0.0
    %207 = vmatpush1.msra.mxu0 0.0
    %208 = vmatprep.subr.mxu0 0.0
    %209 = vmatpush1.msra.mxu0 0.0
    %210 = vmatprep.subr.mxu0 0.0
    %211 = vmatpush1.msra.mxu0 0.0
    %212 = vmatprep.subr.mxu0 %v142
    %213 = vmatpush1.msra.mxu0 %v141
    %214 = vmatprep.subr.mxu0 %v140
    %215 = vmatpush1.msra.mxu0 %v139
    %216 = vmatprep.subr.mxu0 0.0
    %217 = vmatpush2.msra.mxu0 0.0
    %218 = vmatprep.subr.mxu0 0.0
    %219 = vmatpush2.msra.mxu0 0.0
    %220 = vmatprep.subr.mxu0 0.0
    %221 = vmatpush2.msra.mxu0 0.0
    %222 = vmatprep.subr.mxu0 0.0
    %223 = vmatpush2.msra.mxu0 0.0
    %224 = vmatprep.subr.mxu0 0.0
    %225 = vmatpush2.msra.mxu0 0.0
    %226 = vmatprep.subr.mxu0 0.0
    %227 = vmatpush2.msra.mxu0 0.0
    %228 = vmatprep.subr.mxu0 0.0
    %229 = vmatpush2.msra.mxu0 0.0
    %230 = vmatprep.subr.mxu0 0.0
    %231 = vmatpush2.msra.mxu0 0.0
    %232 = vmatprep.subr.mxu0 0.0
    %233 = vmatpush2.msra.mxu0 0.0
    %234 = vmatprep.subr.mxu0 0.0
    %235 = vmatpush2.msra.mxu0 0.0
    %236 = vmatprep.subr.mxu0 0.0
    %237 = vmatpush2.msra.mxu0 0.0
    %238 = vmatprep.subr.mxu0 0.0
    %239 = vmatpush2.msra.mxu0 0.0
    %240 = vmatprep.subr.mxu0 0.0
    %241 = vmatpush2.msra.mxu0 0.0
    %242 = vmatprep.subr.mxu0 0.0
    %243 = vmatpush2.msra.mxu0 0.0
    %244 = vmatprep.subr.mxu0 0.0
    %245 = vmatpush2.msra.mxu0 0.0
    %246 = vmatprep.subr.mxu0 0.0
    %247 = vmatpush2.msra.mxu0 0.0
    %248 = vmatprep.mubr.f32.mxu0 0.0
    %249 = vmatmul.mubr.f32.gmra.mxu0 %v173
    %v250 = vpop.f32.mrf.mxu0
    %v251 = vadd.f32 %v154, %v250
    %v252 = vpop.f32.mrf.mxu0
    %v253 = vadd.f32 %v154, %v252
    %254 = vmatprep.mubr.f32.mxu0 0.0
    %255 = vmatmul.mubr.f32.gmra.mxu0 %v176
    %v256 = vpop.f32.mrf.mxu0
    %v257 = vadd.f32 %v159, %v256
    %v258 = vpop.f32.mrf.mxu0
    %v259 = vadd.f32 %v159, %v258
    %260 = vmatprep.mubr.f32.mxu0 0.0
    %261 = vmatmul.mubr.f32.gmra.mxu0 %v179
    %v262 = vpop.f32.mrf.mxu0
    %v263 = vadd.f32 %v164, %v262
    %v264 = vpop.f32.mrf.mxu0
    %v265 = vadd.f32 %v164, %v264
    %266 = vmatprep.mubr.f32.mxu0 0.0
    %267 = vmatmul.mubr.f32.gmra.mxu0 %v182
    %v268 = vpop.f32.mrf.mxu0
    %v269 = vadd.f32 %v169, %v268
    %v270 = vpop.f32.mrf.mxu0
    %v271 = vadd.f32 %v169, %v270
    %272 = vdwg.mxu0
    %273 = vst [vmem:[#allocation2] sm:$0xff] %v251
    %274 = vst [vmem:[#allocation2 + $0x8] sm:$0xff] %v253
    %275 = vst [vmem:[#allocation2 + $0x10] sm:$0xff] %v257
    %276 = vst [vmem:[#allocation2 + $0x18] sm:$0xff] %v259
    %277 = vst [vmem:[#allocation2 + $0x20] sm:$0xff] %v263
    %278 = vst [vmem:[#allocation2 + $0x28] sm:$0xff] %v265
    %279 = vst [vmem:[#allocation2 + $0x30] sm:$0xff] %v269
    %280 = vst [vmem:[#allocation2 + $0x38] sm:$0xff] %v271
    %v281 = vld [vmem:[%s48] sm:$0xff]
    %v282 = vld [vmem:[%s48 + $0x8] sm:$0xff]
    %v283 = vld [vmem:[%s48 + $0x10] sm:$0xff]
    %v284 = vld [vmem:[%s48 + $0x18] sm:$0xff]
    %285 = vset.pattern.permute.xlu0 1
    %286 = vperm.xlu0 %285, %v103
    %v287 = vpop.permute.xlu0 %286
    %289 = vset.pattern.permute.xlu0 1
    %290 = vperm.xlu0 %289, %v104
    %v291 = vpop.permute.xlu0 %290
    %v293 = vmul.f32 %v287, %v281
    %v294 = vmul.f32 %v287, %v282
    %v295 = vmul.f32 %v291, %v283
    %v296 = vmul.f32 %v291, %v284
    %297 = vset.pattern.permute.xlu0 1
    %298 = vperm.xlu0 %297, %v109
    %v299 = vpop.permute.xlu0 %298
    %301 = vset.pattern.permute.xlu0 1
    %302 = vperm.xlu0 %301, %v110
    %v303 = vpop.permute.xlu0 %302
    %v305 = vadd.f32 %v293, %v299
    %v306 = vadd.f32 %v294, %v299
    %v307 = vadd.f32 %v295, %v303
    %v308 = vadd.f32 %v296, %v303
    %v309 = vmax.f32 %v305, 0.0
    %v310 = vmax.f32 %v306, 0.0
    %v311 = vmax.f32 %v307, 0.0
    %v312 = vmax.f32 %v308, 0.0
    %v313 = vld [vmem:[%s3] sm:$0xff]
    %v314 = vld [vmem:[%s3 + $0x8] sm:$0xff]
    %v315 = vld [vmem:[%s3 + $0x10] sm:$0xff]
    %v316 = vld [vmem:[%s3 + $0x18] sm:$0xff]
    %v317 = vld [vmem:[%s4] sm:$0xff]
    %v318 = vld [vmem:[%s4 + $0x8] sm:$0xff]
    %v319 = vld [vmem:[%s4 + $0x10] sm:$0xff]
    %v320 = vld [vmem:[%s4 + $0x18] sm:$0xff]
    %322 = vset.pattern.permute.xlu0 0
    %323 = vperm.xlu0 %322, %v317
    %v324 = vpop.permute.xlu0 %323
    %327 = vset.pattern.permute.xlu0 0
    %328 = vperm.xlu0 %327, %v318
    %v329 = vpop.permute.xlu0 %328
    %332 = vset.pattern.permute.xlu0 0
    %333 = vperm.xlu0 %332, %v319
    %v334 = vpop.permute.xlu0 %333
    %337 = vset.pattern.permute.xlu0 0
    %338 = vperm.xlu0 %337, %v320
    %v339 = vpop.permute.xlu0 %338
    %v342 = vsel %vm171, %v313, 0
    %v345 = vsel %vm171, %v314, 0
    %v348 = vsel %vm171, %v315, 0
    %v351 = vsel %vm171, %v316, 0
    %353 = vmatprep.subr.mxu0 0.0
    %354 = vmatpush1.msra.mxu0 0.0
    %355 = vmatprep.subr.mxu0 0.0
    %356 = vmatpush1.msra.mxu0 0.0
    %357 = vmatprep.subr.mxu0 0.0
    %358 = vmatpush1.msra.mxu0 0.0
    %359 = vmatprep.subr.mxu0 0.0
    %360 = vmatpush1.msra.mxu0 0.0
    %361 = vmatprep.subr.mxu0 0.0
    %362 = vmatpush1.msra.mxu0 0.0
    %363 = vmatprep.subr.mxu0 0.0
    %364 = vmatpush1.msra.mxu0 0.0
    %365 = vmatprep.subr.mxu0 0.0
    %366 = vmatpush1.msra.mxu0 0.0
    %367 = vmatprep.subr.mxu0 0.0
    %368 = vmatpush1.msra.mxu0 0.0
    %369 = vmatprep.subr.mxu0 0.0
    %370 = vmatpush1.msra.mxu0 0.0
    %371 = vmatprep.subr.mxu0 0.0
    %372 = vmatpush1.msra.mxu0 0.0
    %373 = vmatprep.subr.mxu0 0.0
    %374 = vmatpush1.msra.mxu0 0.0
    %375 = vmatprep.subr.mxu0 0.0
    %376 = vmatpush1.msra.mxu0 0.0
    %377 = vmatprep.subr.mxu0 0.0
    %378 = vmatpush1.msra.mxu0 0.0
    %379 = vmatprep.subr.mxu0 0.0
    %380 = vmatpush1.msra.mxu0 0.0
    %381 = vmatprep.subr.mxu0 %v312
    %382 = vmatpush1.msra.mxu0 %v311
    %383 = vmatprep.subr.mxu0 %v310
    %384 = vmatpush1.msra.mxu0 %v309
    %385 = vmatprep.subr.mxu0 0.0
    %386 = vmatpush2.msra.mxu0 0.0
    %387 = vmatprep.subr.mxu0 0.0
    %388 = vmatpush2.msra.mxu0 0.0
    %389 = vmatprep.subr.mxu0 0.0
    %390 = vmatpush2.msra.mxu0 0.0
    %391 = vmatprep.subr.mxu0 0.0
    %392 = vmatpush2.msra.mxu0 0.0
    %393 = vmatprep.subr.mxu0 0.0
    %394 = vmatpush2.msra.mxu0 0.0
    %395 = vmatprep.subr.mxu0 0.0
    %396 = vmatpush2.msra.mxu0 0.0
    %397 = vmatprep.subr.mxu0 0.0
    %398 = vmatpush2.msra.mxu0 0.0
    %399 = vmatprep.subr.mxu0 0.0
    %400 = vmatpush2.msra.mxu0 0.0
    %401 = vmatprep.subr.mxu0 0.0
    %402 = vmatpush2.msra.mxu0 0.0
    %403 = vmatprep.subr.mxu0 0.0
    %404 = vmatpush2.msra.mxu0 0.0
    %405 = vmatprep.subr.mxu0 0.0
    %406 = vmatpush2.msra.mxu0 0.0
    %407 = vmatprep.subr.mxu0 0.0
    %408 = vmatpush2.msra.mxu0 0.0
    %409 = vmatprep.subr.mxu0 0.0
    %410 = vmatpush2.msra.mxu0 0.0
    %411 = vmatprep.subr.mxu0 0.0
    %412 = vmatpush2.msra.mxu0 0.0
    %413 = vmatprep.subr.mxu0 0.0
    %414 = vmatpush2.msra.mxu0 0.0
    %415 = vmatprep.subr.mxu0 0.0
    %416 = vmatpush2.msra.mxu0 0.0
    %417 = vmatprep.mubr.f32.mxu0 0.0
    %418 = vmatmul.mubr.f32.gmra.mxu0 %v342
    %v419 = vpop.f32.mrf.mxu0
    %v420 = vadd.f32 %v324, %v419
    %v421 = vpop.f32.mrf.mxu0
    %v422 = vadd.f32 %v324, %v421
    %423 = vmatprep.mubr.f32.mxu0 0.0
    %424 = vmatmul.mubr.f32.gmra.mxu0 %v345
    %v425 = vpop.f32.mrf.mxu0
    %v426 = vadd.f32 %v329, %v425
    %v427 = vpop.f32.mrf.mxu0
    %v428 = vadd.f32 %v329, %v427
    %429 = vmatprep.mubr.f32.mxu0 0.0
    %430 = vmatmul.mubr.f32.gmra.mxu0 %v348
    %v431 = vpop.f32.mrf.mxu0
    %v432 = vadd.f32 %v334, %v431
    %v433 = vpop.f32.mrf.mxu0
    %v434 = vadd.f32 %v334, %v433
    %435 = vmatprep.mubr.f32.mxu0 0.0
    %436 = vmatmul.mubr.f32.gmra.mxu0 %v351
    %v437 = vpop.f32.mrf.mxu0
    %v438 = vadd.f32 %v339, %v437
    %v439 = vpop.f32.mrf.mxu0
    %v440 = vadd.f32 %v339, %v439
    %441 = vdwg.mxu0
    %s442 = scalar_lea.vmem [#allocation2], 64
    %443 = vst [vmem:[%s442] sm:$0xff] %v420
    %444 = vst [vmem:[%s442 + $0x8] sm:$0xff] %v422
    %445 = vst [vmem:[%s442 + $0x10] sm:$0xff] %v426
    %446 = vst [vmem:[%s442 + $0x18] sm:$0xff] %v428
    %447 = vst [vmem:[%s442 + $0x20] sm:$0xff] %v432
    %448 = vst [vmem:[%s442 + $0x28] sm:$0xff] %v434
    %449 = vst [vmem:[%s442 + $0x30] sm:$0xff] %v438
    %450 = vst [vmem:[%s442 + $0x38] sm:$0xff] %v440
    %v451 = vld [vmem:[#allocation2] sm:$0xff]
    %v452 = vld [vmem:[#allocation2 + $0x8] sm:$0xff]
    %v453 = vld [vmem:[#allocation2 + $0x10] sm:$0xff]
    %v454 = vld [vmem:[#allocation2 + $0x18] sm:$0xff]
    %v455 = vld [vmem:[#allocation2 + $0x20] sm:$0xff]
    %v456 = vld [vmem:[#allocation2 + $0x28] sm:$0xff]
    %v457 = vld [vmem:[#allocation2 + $0x30] sm:$0xff]
    %v458 = vld [vmem:[#allocation2 + $0x38] sm:$0xff]
    %v459 = vadd.f32 %v451, %v452
    %460 = vadd.xlane.f32.xlu0 %v459
    %v461 = vpop.xlane.xlu0 %460
    %v462 = vadd.f32 %v453, %v454
    %463 = vadd.xlane.f32.xlu0 %v462
    %v464 = vpop.xlane.xlu0 %463
    %v465 = vadd.f32 %v455, %v456
    %466 = vadd.xlane.f32.xlu0 %v465
    %v467 = vpop.xlane.xlu0 %466
    %v468 = vadd.f32 %v457, %v458
    %469 = vadd.xlane.f32.xlu0 %v468
    %v470 = vpop.xlane.xlu0 %469
    %v471 = vadd.f32 %v461, 0.0
    %v472 = vadd.f32 %v464, 0.0
    %v473 = vadd.f32 %v467, 0.0
    %v474 = vadd.f32 %v470, 0.0
    %v475 = vld [vmem:[%s442] sm:$0xff]
    %v476 = vld [vmem:[%s442 + $0x8] sm:$0xff]
    %v477 = vld [vmem:[%s442 + $0x10] sm:$0xff]
    %v478 = vld [vmem:[%s442 + $0x18] sm:$0xff]
    %v479 = vld [vmem:[%s442 + $0x20] sm:$0xff]
    %v480 = vld [vmem:[%s442 + $0x28] sm:$0xff]
    %v481 = vld [vmem:[%s442 + $0x30] sm:$0xff]
    %v482 = vld [vmem:[%s442 + $0x38] sm:$0xff]
    %v483 = vadd.f32 %v475, %v476
    %484 = vadd.xlane.f32.xlu0 %v483
    %v485 = vpop.xlane.xlu0 %484
    %v486 = vadd.f32 %v477, %v478
    %487 = vadd.xlane.f32.xlu0 %v486
    %v488 = vpop.xlane.xlu0 %487
    %v489 = vadd.f32 %v479, %v480
    %490 = vadd.xlane.f32.xlu0 %v489
    %v491 = vpop.xlane.xlu0 %490
    %v492 = vadd.f32 %v481, %v482
    %493 = vadd.xlane.f32.xlu0 %v492
    %v494 = vpop.xlane.xlu0 %493
    %v495 = vadd.f32 %v471, %v485
    %v496 = vadd.f32 %v472, %v488
    %v497 = vadd.f32 %v473, %v491
    %v498 = vadd.f32 %v474, %v494
    %v499 = vmul.f32 %v495, 0.001953125
    %v500 = vmul.f32 %v496, 0.001953125
    %v501 = vmul.f32 %v497, 0.001953125
    %v502 = vmul.f32 %v498, 0.001953125
    %v503 = vsub.f32 %v451, %v499
    %v504 = vsub.f32 %v452, %v499
    %v505 = vsub.f32 %v453, %v500
    %v506 = vsub.f32 %v454, %v500
    %v507 = vsub.f32 %v455, %v501
    %v508 = vsub.f32 %v456, %v501
    %v509 = vsub.f32 %v457, %v502
    %v510 = vsub.f32 %v458, %v502
    %v511 = vmul.f32 %v503, %v503
    %v512 = vmul.f32 %v504, %v504
    %v513 = vmul.f32 %v505, %v505
    %v514 = vmul.f32 %v506, %v506
    %v515 = vmul.f32 %v507, %v507
    %v516 = vmul.f32 %v508, %v508
    %v517 = vmul.f32 %v509, %v509
    %v518 = vmul.f32 %v510, %v510
    %v519 = vadd.f32 %v511, %v512
    %520 = vadd.xlane.f32.xlu0 %v519
    %v521 = vpop.xlane.xlu0 %520
    %v522 = vadd.f32 %v513, %v514
    %523 = vadd.xlane.f32.xlu0 %v522
    %v524 = vpop.xlane.xlu0 %523
    %v525 = vadd.f32 %v515, %v516
    %526 = vadd.xlane.f32.xlu0 %v525
    %v527 = vpop.xlane.xlu0 %526
    %v528 = vadd.f32 %v517, %v518
    %529 = vadd.xlane.f32.xlu0 %v528
    %v530 = vpop.xlane.xlu0 %529
    %v531 = vadd.f32 %v521, 0.0
    %v532 = vadd.f32 %v524, 0.0
    %v533 = vadd.f32 %v527, 0.0
    %v534 = vadd.f32 %v530, 0.0
    %v535 = vsub.f32 %v475, %v499
    %v536 = vsub.f32 %v476, %v499
    %v537 = vsub.f32 %v477, %v500
    %v538 = vsub.f32 %v478, %v500
    %v539 = vsub.f32 %v479, %v501
    %v540 = vsub.f32 %v480, %v501
    %v541 = vsub.f32 %v481, %v502
    %v542 = vsub.f32 %v482, %v502
    %v543 = vmul.f32 %v535, %v535
    %v544 = vmul.f32 %v536, %v536
    %v545 = vmul.f32 %v537, %v537
    %v546 = vmul.f32 %v538, %v538
    %v547 = vmul.f32 %v539, %v539
    %v548 = vmul.f32 %v540, %v540
    %v549 = vmul.f32 %v541, %v541
    %v550 = vmul.f32 %v542, %v542
    %v551 = vadd.f32 %v543, %v544
    %552 = vadd.xlane.f32.xlu0 %v551
    %v553 = vpop.xlane.xlu0 %552
    %v554 = vadd.f32 %v545, %v546
    %555 = vadd.xlane.f32.xlu0 %v554
    %v556 = vpop.xlane.xlu0 %555
    %v557 = vadd.f32 %v547, %v548
    %558 = vadd.xlane.f32.xlu0 %v557
    %v559 = vpop.xlane.xlu0 %558
    %v560 = vadd.f32 %v549, %v550
    %561 = vadd.xlane.f32.xlu0 %v560
    %v562 = vpop.xlane.xlu0 %561
    %v563 = vadd.f32 %v531, %v553
    %v564 = vadd.f32 %v532, %v556
    %v565 = vadd.f32 %v533, %v559
    %v566 = vadd.f32 %v534, %v562
    %v567 = vmul.f32 %v563, 0.001953125
    %v568 = vmul.f32 %v564, 0.001953125
    %v569 = vmul.f32 %v565, 0.001953125
    %v570 = vmul.f32 %v566, 0.001953125
    %v571 = vadd.f32 %v567, 1e-05
    %v572 = vadd.f32 %v568, 1e-05
    %v573 = vadd.f32 %v569, 1e-05
    %v574 = vadd.f32 %v570, 1e-05
    %v575 = vrsqrt.pop %v571
    %v576 = vrsqrt.pop %v572
    %v577 = vrsqrt.pop %v573
    %v578 = vrsqrt.pop %v574
    %v579 = vld [vmem:[%s5] sm:$0xff]
    %v580 = vld [vmem:[%s5 + $0x8] sm:$0xff]
    %v581 = vld [vmem:[%s5 + $0x10] sm:$0xff]
    %v582 = vld [vmem:[%s5 + $0x18] sm:$0xff]
    %v583 = vmul.f32 %v579, %v575
    %v584 = vmul.f32 %v580, %v576
    %v585 = vmul.f32 %v581, %v577
    %v586 = vmul.f32 %v582, %v578
    %v587 = vld [vmem:[%s6] sm:$0xff]
    %v588 = vld [vmem:[%s6 + $0x8] sm:$0xff]
    %v589 = vld [vmem:[%s6 + $0x10] sm:$0xff]
    %v590 = vld [vmem:[%s6 + $0x18] sm:$0xff]
    %v591 = vmul.f32 %v583, %v499
    %v592 = vmul.f32 %v584, %v500
    %v593 = vmul.f32 %v585, %v501
    %v594 = vmul.f32 %v586, %v502
    %v595 = vsub.f32 %v587, %v591
    %v596 = vsub.f32 %v588, %v592
    %v597 = vsub.f32 %v589, %v593
    %v598 = vsub.f32 %v590, %v594
    %600 = vset.pattern.permute.xlu0 0
    %601 = vperm.xlu0 %600, %v583
    %v602 = vpop.permute.xlu0 %601
    %605 = vset.pattern.permute.xlu0 0
    %606 = vperm.xlu0 %605, %v584
    %v607 = vpop.permute.xlu0 %606
    %610 = vset.pattern.permute.xlu0 0
    %611 = vperm.xlu0 %610, %v585
    %v612 = vpop.permute.xlu0 %611
    %615 = vset.pattern.permute.xlu0 0
    %616 = vperm.xlu0 %615, %v586
    %v617 = vpop.permute.xlu0 %616
    %v619 = vmul.f32 %v602, %v451
    %v620 = vmul.f32 %v602, %v452
    %v621 = vmul.f32 %v607, %v453
    %v622 = vmul.f32 %v607, %v454
    %v623 = vmul.f32 %v612, %v455
    %v624 = vmul.f32 %v612, %v456
    %v625 = vmul.f32 %v617, %v457
    %v626 = vmul.f32 %v617, %v458
    %628 = vset.pattern.permute.xlu0 0
    %629 = vperm.xlu0 %628, %v595
    %v630 = vpop.permute.xlu0 %629
    %633 = vset.pattern.permute.xlu0 0
    %634 = vperm.xlu0 %633, %v596
    %v635 = vpop.permute.xlu0 %634
    %638 = vset.pattern.permute.xlu0 0
    %639 = vperm.xlu0 %638, %v597
    %v640 = vpop.permute.xlu0 %639
    %643 = vset.pattern.permute.xlu0 0
    %644 = vperm.xlu0 %643, %v598
    %v645 = vpop.permute.xlu0 %644
    %v647 = vadd.f32 %v619, %v630
    %v648 = vadd.f32 %v620, %v630
    %v649 = vadd.f32 %v621, %v635
    %v650 = vadd.f32 %v622, %v635
    %v651 = vadd.f32 %v623, %v640
    %v652 = vadd.f32 %v624, %v640
    %v653 = vadd.f32 %v625, %v645
    %v654 = vadd.f32 %v626, %v645
    %v655 = vmax.f32 %v647, 0.0
    %v656 = vmax.f32 %v648, 0.0
    %v657 = vmax.f32 %v649, 0.0
    %v658 = vmax.f32 %v650, 0.0
    %v659 = vmax.f32 %v651, 0.0
    %v660 = vmax.f32 %v652, 0.0
    %v661 = vmax.f32 %v653, 0.0
    %v662 = vmax.f32 %v654, 0.0
    %v663 = vld [vmem:[%s7] sm:$0xff]
    %v664 = vld [vmem:[%s7 + $0x8] sm:$0xff]
    %v665 = vld [vmem:[%s7 + $0x10] sm:$0xff]
    %v666 = vld [vmem:[%s8] sm:$0xff]
    %v667 = vld [vmem:[%s8 + $0x8] sm:$0xff]
    %v668 = vld [vmem:[%s8 + $0x10] sm:$0xff]
    %670 = vset.pattern.permute.xlu0 0
    %671 = vperm.xlu0 %670, %v666
    %v672 = vpop.permute.xlu0 %671
    %675 = vset.pattern.permute.xlu0 0
    %676 = vperm.xlu0 %675, %v667
    %v677 = vpop.permute.xlu0 %676
    %680 = vset.pattern.permute.xlu0 0
    %681 = vperm.xlu0 %680, %v668
    %v682 = vpop.permute.xlu0 %681
    %vm684 = vcmask 261120
    %v686 = vsel %vm684, %v663, 0
    %v689 = vsel %vm684, %v664, 0
    %v692 = vsel %vm684, %v665, 0
    %694 = vmatprep.subr.mxu0 0.0
    %695 = vmatpush1.msra.mxu0 0.0
    %696 = vmatprep.subr.mxu0 0.0
    %697 = vmatpush1.msra.mxu0 0.0
    %698 = vmatprep.subr.mxu0 0.0
    %699 = vmatpush1.msra.mxu0 0.0
    %700 = vmatprep.subr.mxu0 0.0
    %701 = vmatpush1.msra.mxu0 0.0
    %702 = vmatprep.subr.mxu0 0.0
    %703 = vmatpush1.msra.mxu0 0.0
    %704 = vmatprep.subr.mxu0 0.0
    %705 = vmatpush1.msra.mxu0 0.0
    %706 = vmatprep.subr.mxu0 0.0
    %707 = vmatpush1.msra.mxu0 0.0
    %708 = vmatprep.subr.mxu0 0.0
    %709 = vmatpush1.msra.mxu0 0.0
    %710 = vmatprep.subr.mxu0 0.0
    %711 = vmatpush1.msra.mxu0 0.0
    %712 = vmatprep.subr.mxu0 0.0
    %713 = vmatpush1.msra.mxu0 0.0
    %714 = vmatprep.subr.mxu0 0.0
    %715 = vmatpush1.msra.mxu0 0.0
    %716 = vmatprep.subr.mxu0 0.0
    %717 = vmatpush1.msra.mxu0 0.0
    %718 = vmatprep.subr.mxu0 %v662
    %719 = vmatpush1.msra.mxu0 %v661
    %720 = vmatprep.subr.mxu0 %v660
    %721 = vmatpush1.msra.mxu0 %v659
    %722 = vmatprep.subr.mxu0 %v658
    %723 = vmatpush1.msra.mxu0 %v657
    %724 = vmatprep.subr.mxu0 %v656
    %725 = vmatpush1.msra.mxu0 %v655
    %726 = vmatprep.subr.mxu0 0.0
    %727 = vmatpush2.msra.mxu0 0.0
    %728 = vmatprep.subr.mxu0 0.0
    %729 = vmatpush2.msra.mxu0 0.0
    %730 = vmatprep.subr.mxu0 0.0
    %731 = vmatpush2.msra.mxu0 0.0
    %732 = vmatprep.subr.mxu0 0.0
    %733 = vmatpush2.msra.mxu0 0.0
    %734 = vmatprep.subr.mxu0 0.0
    %735 = vmatpush2.msra.mxu0 0.0
    %736 = vmatprep.subr.mxu0 0.0
    %737 = vmatpush2.msra.mxu0 0.0
    %738 = vmatprep.subr.mxu0 0.0
    %739 = vmatpush2.msra.mxu0 0.0
    %740 = vmatprep.subr.mxu0 0.0
    %741 = vmatpush2.msra.mxu0 0.0
    %742 = vmatprep.subr.mxu0 0.0
    %743 = vmatpush2.msra.mxu0 0.0
    %744 = vmatprep.subr.mxu0 0.0
    %745 = vmatpush2.msra.mxu0 0.0
    %746 = vmatprep.subr.mxu0 0.0
    %747 = vmatpush2.msra.mxu0 0.0
    %748 = vmatprep.subr.mxu0 0.0
    %749 = vmatpush2.msra.mxu0 0.0
    %750 = vmatprep.subr.mxu0 0.0
    %751 = vmatpush2.msra.mxu0 0.0
    %752 = vmatprep.subr.mxu0 0.0
    %753 = vmatpush2.msra.mxu0 0.0
    %754 = vmatprep.subr.mxu0 0.0
    %755 = vmatpush2.msra.mxu0 0.0
    %756 = vmatprep.subr.mxu0 0.0
    %757 = vmatpush2.msra.mxu0 0.0
    %758 = vmatprep.mubr.f32.mxu0 0.0
    %759 = vmatmul.mubr.f32.gmra.mxu0 %v686
    %v760 = vpop.f32.mrf.mxu0
    %v761 = vadd.f32 %v672, %v760
    %v762 = vpop.f32.mrf.mxu0
    %v763 = vadd.f32 %v672, %v762
    %764 = vmatprep.mubr.f32.mxu0 0.0
    %765 = vmatmul.mubr.f32.gmra.mxu0 %v689
    %v766 = vpop.f32.mrf.mxu0
    %v767 = vadd.f32 %v677, %v766
    %v768 = vpop.f32.mrf.mxu0
    %v769 = vadd.f32 %v677, %v768
    %770 = vmatprep.mubr.f32.mxu0 0.0
    %771 = vmatmul.mubr.f32.gmra.mxu0 %v692
    %v772 = vpop.f32.mrf.mxu0
    %v773 = vadd.f32 %v682, %v772
    %v774 = vpop.f32.mrf.mxu0
    %v775 = vadd.f32 %v682, %v774
    %776 = vdwg.mxu0
    %v777 = vld [vmem:[%s9] sm:$0xff]
    %v778 = vld [vmem:[%s9 + $0x8] sm:$0xff]
    %v779 = vld [vmem:[%s9 + $0x10] sm:$0xff]
    %v780 = vld [vmem:[%s0] sm:$0xff]
    %v781 = vld [vmem:[%s0 + $0x8] sm:$0xff]
    %v782 = vld [vmem:[%s0 + $0x10] sm:$0xff]
    %v783 = vld [vmem:[%s0 + $0x18] sm:$0xff]
    %v785 = vsel %vm171, %v777, 0
    %v788 = vsel %vm171, %v778, 0
    %v791 = vsel %vm171, %v779, 0
    %793 = vmatprep.subr.mxu0 0.0
    %794 = vmatpush1.msra.mxu0 0.0
    %795 = vmatprep.subr.mxu0 0.0
    %796 = vmatpush1.msra.mxu0 0.0
    %797 = vmatprep.subr.mxu0 0.0
    %798 = vmatpush1.msra.mxu0 0.0
    %799 = vmatprep.subr.mxu0 0.0
    %800 = vmatpush1.msra.mxu0 0.0
    %801 = vmatprep.subr.mxu0 0.0
    %802 = vmatpush1.msra.mxu0 0.0
    %803 = vmatprep.subr.mxu0 0.0
    %804 = vmatpush1.msra.mxu0 0.0
    %805 = vmatprep.subr.mxu0 0.0
    %806 = vmatpush1.msra.mxu0 0.0
    %807 = vmatprep.subr.mxu0 0.0
    %808 = vmatpush1.msra.mxu0 0.0
    %809 = vmatprep.subr.mxu0 0.0
    %810 = vmatpush1.msra.mxu0 0.0
    %811 = vmatprep.subr.mxu0 0.0
    %812 = vmatpush1.msra.mxu0 0.0
    %813 = vmatprep.subr.mxu0 0.0
    %814 = vmatpush1.msra.mxu0 0.0
    %815 = vmatprep.subr.mxu0 0.0
    %816 = vmatpush1.msra.mxu0 0.0
    %817 = vmatprep.subr.mxu0 0.0
    %818 = vmatpush1.msra.mxu0 0.0
    %819 = vmatprep.subr.mxu0 0.0
    %820 = vmatpush1.msra.mxu0 0.0
    %821 = vmatprep.subr.mxu0 %v783
    %822 = vmatpush1.msra.mxu0 %v782
    %823 = vmatprep.subr.mxu0 %v781
    %824 = vmatpush1.msra.mxu0 %v780
    %825 = vmatprep.subr.mxu0 0.0
    %826 = vmatpush2.msra.mxu0 0.0
    %827 = vmatprep.subr.mxu0 0.0
    %828 = vmatpush2.msra.mxu0 0.0
    %829 = vmatprep.subr.mxu0 0.0
    %830 = vmatpush2.msra.mxu0 0.0
    %831 = vmatprep.subr.mxu0 0.0
    %832 = vmatpush2.msra.mxu0 0.0
    %833 = vmatprep.subr.mxu0 0.0
    %834 = vmatpush2.msra.mxu0 0.0
    %835 = vmatprep.subr.mxu0 0.0
    %836 = vmatpush2.msra.mxu0 0.0
    %837 = vmatprep.subr.mxu0 0.0
    %838 = vmatpush2.msra.mxu0 0.0
    %839 = vmatprep.subr.mxu0 0.0
    %840 = vmatpush2.msra.mxu0 0.0
    %841 = vmatprep.subr.mxu0 0.0
    %842 = vmatpush2.msra.mxu0 0.0
    %843 = vmatprep.subr.mxu0 0.0
    %844 = vmatpush2.msra.mxu0 0.0
    %845 = vmatprep.subr.mxu0 0.0
    %846 = vmatpush2.msra.mxu0 0.0
    %847 = vmatprep.subr.mxu0 0.0
    %848 = vmatpush2.msra.mxu0 0.0
    %849 = vmatprep.subr.mxu0 0.0
    %850 = vmatpush2.msra.mxu0 0.0
    %851 = vmatprep.subr.mxu0 0.0
    %852 = vmatpush2.msra.mxu0 0.0
    %853 = vmatprep.subr.mxu0 0.0
    %854 = vmatpush2.msra.mxu0 0.0
    %855 = vmatprep.subr.mxu0 0.0
    %856 = vmatpush2.msra.mxu0 0.0
    %857 = vmatprep.mubr.f32.mxu0 0.0
    %858 = vmatmul.mubr.f32.gmra.mxu0 %v785
    %v859 = vpop.f32.mrf.mxu0
    %v860 = vadd.f32 %v761, %v859
    %v861 = vpop.f32.mrf.mxu0
    %v862 = vadd.f32 %v763, %v861
    %863 = vmatprep.mubr.f32.mxu0 0.0
    %864 = vmatmul.mubr.f32.gmra.mxu0 %v788
    %v865 = vpop.f32.mrf.mxu0
    %v866 = vadd.f32 %v767, %v865
    %v867 = vpop.f32.mrf.mxu0
    %v868 = vadd.f32 %v769, %v867
    %869 = vmatprep.mubr.f32.mxu0 0.0
    %870 = vmatmul.mubr.f32.gmra.mxu0 %v791
    %v871 = vpop.f32.mrf.mxu0
    %v872 = vadd.f32 %v773, %v871
    %v873 = vpop.f32.mrf.mxu0
    %v874 = vadd.f32 %v775, %v873
    %875 = vdwg.mxu0
    %876 = vst [vmem:[#allocation3] sm:$0xff] %v860
    %877 = vst [vmem:[#allocation3 + $0x8] sm:$0xff] %v862
    %878 = vst [vmem:[#allocation3 + $0x10] sm:$0xff] %v866
    %879 = vst [vmem:[#allocation3 + $0x18] sm:$0xff] %v868
    %880 = vst [vmem:[#allocation3 + $0x20] sm:$0xff] %v872
    %881 = vst [vmem:[#allocation3 + $0x28] sm:$0xff] %v874
    %v882 = vld [vmem:[%s442] sm:$0xff]
    %v883 = vld [vmem:[%s442 + $0x8] sm:$0xff]
    %v884 = vld [vmem:[%s442 + $0x10] sm:$0xff]
    %v885 = vld [vmem:[%s442 + $0x18] sm:$0xff]
    %v886 = vld [vmem:[%s442 + $0x20] sm:$0xff]
    %v887 = vld [vmem:[%s442 + $0x28] sm:$0xff]
    %v888 = vld [vmem:[%s442 + $0x30] sm:$0xff]
    %v889 = vld [vmem:[%s442 + $0x38] sm:$0xff]
    %890 = vset.pattern.permute.xlu0 1
    %891 = vperm.xlu0 %890, %v583
    %v892 = vpop.permute.xlu0 %891
    %894 = vset.pattern.permute.xlu0 1
    %895 = vperm.xlu0 %894, %v584
    %v896 = vpop.permute.xlu0 %895
    %898 = vset.pattern.permute.xlu0 1
    %899 = vperm.xlu0 %898, %v585
    %v900 = vpop.permute.xlu0 %899
    %902 = vset.pattern.permute.xlu0 1
    %903 = vperm.xlu0 %902, %v586
    %v904 = vpop.permute.xlu0 %903
    %v906 = vmul.f32 %v892, %v882
    %v907 = vmul.f32 %v892, %v883
    %v908 = vmul.f32 %v896, %v884
    %v909 = vmul.f32 %v896, %v885
    %v910 = vmul.f32 %v900, %v886
    %v911 = vmul.f32 %v900, %v887
    %v912 = vmul.f32 %v904, %v888
    %v913 = vmul.f32 %v904, %v889
    %914 = vset.pattern.permute.xlu0 1
    %915 = vperm.xlu0 %914, %v595
    %v916 = vpop.permute.xlu0 %915
    %918 = vset.pattern.permute.xlu0 1
    %919 = vperm.xlu0 %918, %v596
    %v920 = vpop.permute.xlu0 %919
    %922 = vset.pattern.permute.xlu0 1
    %923 = vperm.xlu0 %922, %v597
    %v924 = vpop.permute.xlu0 %923
    %926 = vset.pattern.permute.xlu0 1
    %927 = vperm.xlu0 %926, %v598
    %v928 = vpop.permute.xlu0 %927
    %v930 = vadd.f32 %v906, %v916
    %v931 = vadd.f32 %v907, %v916
    %v932 = vadd.f32 %v908, %v920
    %v933 = vadd.f32 %v909, %v920
    %v934 = vadd.f32 %v910, %v924
    %v935 = vadd.f32 %v911, %v924
    %v936 = vadd.f32 %v912, %v928
    %v937 = vadd.f32 %v913, %v928
    %v938 = vmax.f32 %v930, 0.0
    %v939 = vmax.f32 %v931, 0.0
    %v940 = vmax.f32 %v932, 0.0
    %v941 = vmax.f32 %v933, 0.0
    %v942 = vmax.f32 %v934, 0.0
    %v943 = vmax.f32 %v935, 0.0
    %v944 = vmax.f32 %v936, 0.0
    %v945 = vmax.f32 %v937, 0.0
    %v946 = vld [vmem:[%s7] sm:$0xff]
    %v947 = vld [vmem:[%s7 + $0x8] sm:$0xff]
    %v948 = vld [vmem:[%s7 + $0x10] sm:$0xff]
    %v949 = vld [vmem:[%s8] sm:$0xff]
    %v950 = vld [vmem:[%s8 + $0x8] sm:$0xff]
    %v951 = vld [vmem:[%s8 + $0x10] sm:$0xff]
    %953 = vset.pattern.permute.xlu0 0
    %954 = vperm.xlu0 %953, %v949
    %v955 = vpop.permute.xlu0 %954
    %958 = vset.pattern.permute.xlu0 0
    %959 = vperm.xlu0 %958, %v950
    %v960 = vpop.permute.xlu0 %959
    %963 = vset.pattern.permute.xlu0 0
    %964 = vperm.xlu0 %963, %v951
    %v965 = vpop.permute.xlu0 %964
    %v968 = vsel %vm684, %v946, 0
    %v971 = vsel %vm684, %v947, 0
    %v974 = vsel %vm684, %v948, 0
    %976 = vmatprep.subr.mxu0 0.0
    %977 = vmatpush1.msra.mxu0 0.0
    %978 = vmatprep.subr.mxu0 0.0
    %979 = vmatpush1.msra.mxu0 0.0
    %980 = vmatprep.subr.mxu0 0.0
    %981 = vmatpush1.msra.mxu0 0.0
    %982 = vmatprep.subr.mxu0 0.0
    %983 = vmatpush1.msra.mxu0 0.0
    %984 = vmatprep.subr.mxu0 0.0
    %985 = vmatpush1.msra.mxu0 0.0
    %986 = vmatprep.subr.mxu0 0.0
    %987 = vmatpush1.msra.mxu0 0.0
    %988 = vmatprep.subr.mxu0 0.0
    %989 = vmatpush1.msra.mxu0 0.0
    %990 = vmatprep.subr.mxu0 0.0
    %991 = vmatpush1.msra.mxu0 0.0
    %992 = vmatprep.subr.mxu0 0.0
    %993 = vmatpush1.msra.mxu0 0.0
    %994 = vmatprep.subr.mxu0 0.0
    %995 = vmatpush1.msra.mxu0 0.0
    %996 = vmatprep.subr.mxu0 0.0
    %997 = vmatpush1.msra.mxu0 0.0
    %998 = vmatprep.subr.mxu0 0.0
    %999 = vmatpush1.msra.mxu0 0.0
    %1000 = vmatprep.subr.mxu0 %v945
    %1001 = vmatpush1.msra.mxu0 %v944
    %1002 = vmatprep.subr.mxu0 %v943
    %1003 = vmatpush1.msra.mxu0 %v942
    %1004 = vmatprep.subr.mxu0 %v941
    %1005 = vmatpush1.msra.mxu0 %v940
    %1006 = vmatprep.subr.mxu0 %v939
    %1007 = vmatpush1.msra.mxu0 %v938
    %1008 = vmatprep.subr.mxu0 0.0
    %1009 = vmatpush2.msra.mxu0 0.0
    %1010 = vmatprep.subr.mxu0 0.0
    %1011 = vmatpush2.msra.mxu0 0.0
    %1012 = vmatprep.subr.mxu0 0.0
    %1013 = vmatpush2.msra.mxu0 0.0
    %1014 = vmatprep.subr.mxu0 0.0
    %1015 = vmatpush2.msra.mxu0 0.0
    %1016 = vmatprep.subr.mxu0 0.0
    %1017 = vmatpush2.msra.mxu0 0.0
    %1018 = vmatprep.subr.mxu0 0.0
    %1019 = vmatpush2.msra.mxu0 0.0
    %1020 = vmatprep.subr.mxu0 0.0
    %1021 = vmatpush2.msra.mxu0 0.0
    %1022 = vmatprep.subr.mxu0 0.0
    %1023 = vmatpush2.msra.mxu0 0.0
    %1024 = vmatprep.subr.mxu0 0.0
    %1025 = vmatpush2.msra.mxu0 0.0
    %1026 = vmatprep.subr.mxu0 0.0
    %1027 = vmatpush2.msra.mxu0 0.0
    %1028 = vmatprep.subr.mxu0 0.0
    %1029 = vmatpush2.msra.mxu0 0.0
    %1030 = vmatprep.subr.mxu0 0.0
    %1031 = vmatpush2.msra.mxu0 0.0
    %1032 = vmatprep.subr.mxu0 0.0
    %1033 = vmatpush2.msra.mxu0 0.0
    %1034 = vmatprep.subr.mxu0 0.0
    %1035 = vmatpush2.msra.mxu0 0.0
    %1036 = vmatprep.subr.mxu0 0.0
    %1037 = vmatpush2.msra.mxu0 0.0
    %1038 = vmatprep.subr.mxu0 0.0
    %1039 = vmatpush2.msra.mxu0 0.0
    %1040 = vmatprep.mubr.f32.mxu0 0.0
    %1041 = vmatmul.mubr.f32.gmra.mxu0 %v968
    %v1042 = vpop.f32.mrf.mxu0
    %v1043 = vadd.f32 %v955, %v1042
    %v1044 = vpop.f32.mrf.mxu0
    %v1045 = vadd.f32 %v955, %v1044
    %1046 = vmatprep.mubr.f32.mxu0 0.0
    %1047 = vmatmul.mubr.f32.gmra.mxu0 %v971
    %v1048 = vpop.f32.mrf.mxu0
    %v1049 = vadd.f32 %v960, %v1048
    %v1050 = vpop.f32.mrf.mxu0
    %v1051 = vadd.f32 %v960, %v1050
    %1052 = vmatprep.mubr.f32.mxu0 0.0
    %1053 = vmatmul.mubr.f32.gmra.mxu0 %v974
    %v1054 = vpop.f32.mrf.mxu0
    %v1055 = vadd.f32 %v965, %v1054
    %v1056 = vpop.f32.mrf.mxu0
    %v1057 = vadd.f32 %v965, %v1056
    %1058 = vdwg.mxu0
    %v1059 = vld [vmem:[%s9] sm:$0xff]
    %v1060 = vld [vmem:[%s9 + $0x8] sm:$0xff]
    %v1061 = vld [vmem:[%s9 + $0x10] sm:$0xff]
    %v1062 = vld [vmem:[%s48] sm:$0xff]
    %v1063 = vld [vmem:[%s48 + $0x8] sm:$0xff]
    %v1064 = vld [vmem:[%s48 + $0x10] sm:$0xff]
    %v1065 = vld [vmem:[%s48 + $0x18] sm:$0xff]
    %v1067 = vsel %vm171, %v1059, 0
    %v1070 = vsel %vm171, %v1060, 0
    %v1073 = vsel %vm171, %v1061, 0
    %1075 = vmatprep.subr.mxu0 0.0
    %1076 = vmatpush1.msra.mxu0 0.0
    %1077 = vmatprep.subr.mxu0 0.0
    %1078 = vmatpush1.msra.mxu0 0.0
    %1079 = vmatprep.subr.mxu0 0.0
    %1080 = vmatpush1.msra.mxu0 0.0
    %1081 = vmatprep.subr.mxu0 0.0
    %1082 = vmatpush1.msra.mxu0 0.0
    %1083 = vmatprep.subr.mxu0 0.0
    %1084 = vmatpush1.msra.mxu0 0.0
    %1085 = vmatprep.subr.mxu0 0.0
    %1086 = vmatpush1.msra.mxu0 0.0
    %1087 = vmatprep.subr.mxu0 0.0
    %1088 = vmatpush1.msra.mxu0 0.0
    %1089 = vmatprep.subr.mxu0 0.0
    %1090 = vmatpush1.msra.mxu0 0.0
    %1091 = vmatprep.subr.mxu0 0.0
    %1092 = vmatpush1.msra.mxu0 0.0
    %1093 = vmatprep.subr.mxu0 0.0
    %1094 = vmatpush1.msra.mxu0 0.0
    %1095 = vmatprep.subr.mxu0 0.0
    %1096 = vmatpush1.msra.mxu0 0.0
    %1097 = vmatprep.subr.mxu0 0.0
    %1098 = vmatpush1.msra.mxu0 0.0
    %1099 = vmatprep.subr.mxu0 0.0
    %1100 = vmatpush1.msra.mxu0 0.0
    %1101 = vmatprep.subr.mxu0 0.0
    %1102 = vmatpush1.msra.mxu0 0.0
    %1103 = vmatprep.subr.mxu0 %v1065
    %1104 = vmatpush1.msra.mxu0 %v1064
    %1105 = vmatprep.subr.mxu0 %v1063
    %1106 = vmatpush1.msra.mxu0 %v1062
    %1107 = vmatprep.subr.mxu0 0.0
    %1108 = vmatpush2.msra.mxu0 0.0
    %1109 = vmatprep.subr.mxu0 0.0
    %1110 = vmatpush2.msra.mxu0 0.0
    %1111 = vmatprep.subr.mxu0 0.0
    %1112 = vmatpush2.msra.mxu0 0.0
    %1113 = vmatprep.subr.mxu0 0.0
    %1114 = vmatpush2.msra.mxu0 0.0
    %1115 = vmatprep.subr.mxu0 0.0
    %1116 = vmatpush2.msra.mxu0 0.0
    %1117 = vmatprep.subr.mxu0 0.0
    %1118 = vmatpush2.msra.mxu0 0.0
    %1119 = vmatprep.subr.mxu0 0.0
    %1120 = vmatpush2.msra.mxu0 0.0
    %1121 = vmatprep.subr.mxu0 0.0
    %1122 = vmatpush2.msra.mxu0 0.0
    %1123 = vmatprep.subr.mxu0 0.0
    %1124 = vmatpush2.msra.mxu0 0.0
    %1125 = vmatprep.subr.mxu0 0.0
    %1126 = vmatpush2.msra.mxu0 0.0
    %1127 = vmatprep.subr.mxu0 0.0
    %1128 = vmatpush2.msra.mxu0 0.0
    %1129 = vmatprep.subr.mxu0 0.0
    %1130 = vmatpush2.msra.mxu0 0.0
    %1131 = vmatprep.subr.mxu0 0.0
    %1132 = vmatpush2.msra.mxu0 0.0
    %1133 = vmatprep.subr.mxu0 0.0
    %1134 = vmatpush2.msra.mxu0 0.0
    %1135 = vmatprep.subr.mxu0 0.0
    %1136 = vmatpush2.msra.mxu0 0.0
    %1137 = vmatprep.subr.mxu0 0.0
    %1138 = vmatpush2.msra.mxu0 0.0
    %1139 = vmatprep.mubr.f32.mxu0 0.0
    %1140 = vmatmul.mubr.f32.gmra.mxu0 %v1067
    %v1141 = vpop.f32.mrf.mxu0
    %v1142 = vadd.f32 %v1043, %v1141
    %v1143 = vpop.f32.mrf.mxu0
    %v1144 = vadd.f32 %v1045, %v1143
    %1145 = vmatprep.mubr.f32.mxu0 0.0
    %1146 = vmatmul.mubr.f32.gmra.mxu0 %v1070
    %v1147 = vpop.f32.mrf.mxu0
    %v1148 = vadd.f32 %v1049, %v1147
    %v1149 = vpop.f32.mrf.mxu0
    %v1150 = vadd.f32 %v1051, %v1149
    %1151 = vmatprep.mubr.f32.mxu0 0.0
    %1152 = vmatmul.mubr.f32.gmra.mxu0 %v1073
    %v1153 = vpop.f32.mrf.mxu0
    %v1154 = vadd.f32 %v1055, %v1153
    %v1155 = vpop.f32.mrf.mxu0
    %v1156 = vadd.f32 %v1057, %v1155
    %1157 = vdwg.mxu0
    %s1158 = scalar_lea.vmem [#allocation3], 48
    %1159 = vst [vmem:[%s1158] sm:$0xff] %v1142
    %1160 = vst [vmem:[%s1158 + $0x8] sm:$0xff] %v1144
    %1161 = vst [vmem:[%s1158 + $0x10] sm:$0xff] %v1148
    %1162 = vst [vmem:[%s1158 + $0x18] sm:$0xff] %v1150
    %1163 = vst [vmem:[%s1158 + $0x20] sm:$0xff] %v1154
    %1164 = vst [vmem:[%s1158 + $0x28] sm:$0xff] %v1156
    // Predicated region
    $region42: #{tpu_custom_call.1} parent=1 // pred_check
      _
    $region43: #{tpu_custom_call.1} parent=1 // pred_check_branch
      %1166 = sbr.rel (0) target = $region45
    $region44: #{tpu_custom_call.1} parent=1 // pred_region
      %s1168 = ssub.s32 1536, 1536
      %1169 = vsyncadd [#allocation4], %s1168
      %s1170 = sshll.u32 [#allocation3], 4
      %s1171 = int_to_ptr.vmem [resolvable:$true] %s1170
      %1176 = dma.vmem_to_hbm [thread:$0]  %s1171, 1536, %s10, [#allocation4], 256, 256, 16
    $region45: #{tpu_custom_call.1} parent=1 // pred_fallthru
      _
    // Predicated region
    $region46: #{tpu_custom_call.1} parent=1 // pred_check
      _
    $region47: #{tpu_custom_call.1} parent=1 // pred_check_branch
      %1178 = sbr.rel (0) target = $region49
    $region48: #{tpu_custom_call.1} parent=1 // pred_region
      %1179 = dma.done [#allocation4], 1536
    $region49: #{tpu_custom_call.1} parent=1 // pred_fallthru
      _
    %1180 = vsyncpa [#allocation4], 1

</llo_original>
